<compile_context>
chip_gen: v6e
topology: v6e:2x2x1
jax: 0.10.0
libtpu: 0.0.40
codegen_flags: <defaults>
</compile_context>

<pallas_src>
import jax
import jax.numpy as jnp
from jax import lax
from jax.experimental import pallas as pl
from jax.experimental.pallas import tpu as pltpu


def _softplus(x):
    # numerically stable softplus (matches F.softplus within f32 round-off)
    return jnp.maximum(x, 0.0) + jnp.log(1.0 + jnp.exp(-jnp.abs(x)))


def ntm_read_head_kernel(emb_ref, w_ref, b_ref, mem_ref, wprev_ref,
                         read_ref, weights_ref):
    emb = emb_ref[...]          # (TB, C)
    mem = mem_ref[...]          # (TB, M, N)  -- lane dim is N (lane dense)
    w_prev = wprev_ref[...]     # (TB, N)

    TB, M, _ = mem.shape
    RPAD = read_ref.shape[1]

    # ---- fc_read: one lane-dense MXU dot; gates are static lane slices ----
    proj = jnp.dot(emb, w_ref[...], preferred_element_type=jnp.float32) + b_ref[...]
    k = proj[:, 0:M]                                  # (TB, M)
    beta = _softplus(proj[:, M:M + 1])                # (TB, 1)
    g = 1.0 / (1.0 + jnp.exp(-proj[:, M + 1:M + 2]))  # (TB, 1) sigmoid
    s_raw = proj[:, M + 2:M + 5]                      # (TB, 3)
    gamma = 1.0 + _softplus(proj[:, M + 5:M + 6])     # (TB, 1)

    s_e = jnp.exp(s_raw - jnp.max(s_raw, axis=1, keepdims=True))
    s = s_e / jnp.sum(s_e, axis=1, keepdims=True)     # exact softmax

    # ---- content addressing: softmax(beta * cosine(mem, k)) over N ----
    # Single sweep over the resident mem tile gives both reductions over M
    # (VPU multiply + sublane reduce; no per-batch 1-row MXU matmuls).
    kb = k[:, :, None]                                # (TB, M, 1)
    dot = jnp.sum(mem * kb, axis=1)                   # (TB, N)
    mem_sq = jnp.sum(mem * mem, axis=1)               # (TB, N)
    k_sq = jnp.sum(k * k, axis=1, keepdims=True)      # (TB, 1)
    # rsqrt(max(x^2, 1e-16)) == 1 / max(|x|, 1e-8)  (the reference's clamp)
    inv_norm = lax.rsqrt(jnp.maximum(mem_sq, 1e-16)) * lax.rsqrt(jnp.maximum(k_sq, 1e-16))
    cos = dot * inv_norm                              # (TB, N)

    z = beta * cos
    ez = jnp.exp(z - jnp.max(z, axis=1, keepdims=True))
    wc = ez / jnp.sum(ez, axis=1, keepdims=True)      # exact softmax

    # ---- interpolate ----
    wg = g * wc + (1.0 - g) * w_prev                  # (TB, N)

    # ---- circular 3-tap shift (matches F.conv1d cross-correlation) ----
    wg_m1 = jnp.roll(wg, 1, axis=1)                   # wg[(i-1) % N]
    wg_p1 = jnp.roll(wg, -1, axis=1)                  # wg[(i+1) % N]
    w_hat = s[:, 0:1] * wg_m1 + s[:, 1:2] * wg + s[:, 2:3] * wg_p1

    # ---- sharpen: w_hat ** gamma, exact renormalization (feeds back as w_prev) ----
    w_pow = jnp.exp(gamma * jnp.log(jnp.maximum(w_hat, 1e-38)))
    w = w_pow / (jnp.sum(w_pow, axis=1, keepdims=True) + 1e-16)   # (TB, N)

    # ---- memory read: VPU multiply + lane reduce over N; lane-dense store ----
    read = jnp.sum(mem * w[:, None, :], axis=2)       # (TB, M)
    if RPAD > M:
        read = jnp.concatenate(
            [read, jnp.zeros((TB, RPAD - M), dtype=read.dtype)], axis=1)

    weights_ref[...] = w.astype(weights_ref.dtype)
    read_ref[...] = read.astype(read_ref.dtype)


def ntm_read_head(embeddings, fc_weight, fc_bias, memory, w_prev, *, batch_tile=None):
    """embeddings (B,C), fc_weight (L,C) [torch layout], fc_bias (L,),
    memory (B,N,M), w_prev (B,N).  L = M + 6.  Returns (read (B,M), weights (B,N))."""
    B, C = embeddings.shape
    _, N, M = memory.shape
    L = M + 6
    assert fc_weight.shape == (L, C) and fc_bias.shape == (L,)

    # Single grid step (TB = B) is best on single-TC v5e/v6e for small/medium B.
    # On v7x (2 TensorCores) pass batch_tile = B // 2 so both cores get a tile.
    TB = B if batch_tile is None else min(batch_tile, B)
    assert B % TB == 0 and (TB == B or TB % 8 == 0), \
        "batch tile must divide B and be a multiple of 8 (f32 sublanes) unless TB == B"

    LPAD = max(128, pl.cdiv(L, 128) * 128)   # lane-dense fused projection width
    RPAD = max(128, pl.cdiv(M, 128) * 128)   # lane-dense read output width

    # Fused, zero-padded fc_read weight/bias (trace-time prep, free).
    w_full = jnp.zeros((C, LPAD), jnp.float32).at[:, :L].set(
        fc_weight.T.astype(jnp.float32))
    b_full = jnp.zeros((1, LPAD), jnp.float32).at[:, :L].set(
        fc_bias.astype(jnp.float32))

    # Memory transposed to (B, M, N): lane dim = N. In a full NTM loop, keep the
    # memory in this layout so the transpose is not paid per timestep.
    mem_t = jnp.transpose(memory, (0, 2, 1)).astype(jnp.float32)

    grid = (B // TB,)
    cost = pl.CostEstimate(
        flops=2 * B * (C * LPAD + 2 * N * M) + 20 * B * N,
        transcendentals=B * (2 * N + 16),
        bytes_accessed=4 * (B * C + C * LPAD + LPAD + B * N * M
                            + 2 * B * N + B * RPAD),
    )

    read_pad, weights = pl.pallas_call(
        ntm_read_head_kernel,
        out_shape=(jax.ShapeDtypeStruct((B, RPAD), jnp.float32),
                   jax.ShapeDtypeStruct((B, N), jnp.float32)),
        grid_spec=pltpu.PrefetchScalarGridSpec(
            num_scalar_prefetch=0,
            grid=grid,
            in_specs=[
                pl.BlockSpec((TB, C), lambda i: (i, 0)),         # embeddings
                pl.BlockSpec((C, LPAD), lambda i: (0, 0)),       # fused fc weight
                pl.BlockSpec((1, LPAD), lambda i: (0, 0)),       # fused fc bias
                pl.BlockSpec((TB, M, N), lambda i: (i, 0, 0)),   # memory (B, M, N)
                pl.BlockSpec((TB, N), lambda i: (i, 0)),         # w_prev
            ],
            out_specs=(
                pl.BlockSpec((TB, RPAD), lambda i: (i, 0)),      # read (lane padded)
                pl.BlockSpec((TB, N), lambda i: (i, 0)),         # weights
            ),
        ),
        compiler_params=pltpu.CompilerParams(
            dimension_semantics=("parallel",),
            vmem_limit_bytes=32 * 1024 * 1024,
        ),
        cost_estimate=cost,
    )(embeddings.astype(jnp.float32), w_full, b_full, mem_t,
      w_prev.astype(jnp.float32))

    return read_pad[:, :M], weights


def ntm_read_head_ref(embeddings, fc_weight, fc_bias, memory, w_prev):
    """Pure-JAX reference mirroring the PyTorch module."""
    M = memory.shape[-1]
    input_mat = embeddings @ fc_weight.T + fc_bias
    k = input_mat[:, :M]
    beta = jax.nn.softplus(input_mat[:, M:M + 1])
    g = jax.nn.sigmoid(input_mat[:, M + 1:M + 2])
    s = jax.nn.softmax(input_mat[:, M + 2:M + 5], axis=1)
    gamma = 1.0 + jax.nn.softplus(input_mat[:, M + 5:M + 6])

    mem_e = memory + 1e-16
    k_e = k + 1e-16
    dot = jnp.einsum('bnm,bm->bn', mem_e, k_e)
    cos = dot / (jnp.maximum(jnp.linalg.norm(mem_e, axis=-1), 1e-8) *
                 jnp.maximum(jnp.linalg.norm(k_e, axis=-1, keepdims=True), 1e-8))
    wc = jax.nn.softmax(beta * cos, axis=1)
    wg = g * wc + (1.0 - g) * w_prev
    w_hat = (s[:, 0:1] * jnp.roll(wg, 1, axis=1) +
             s[:, 1:2] * wg +
             s[:, 2:3] * jnp.roll(wg, -1, axis=1))
    w_pow = w_hat ** gamma
    w = w_pow / (jnp.sum(w_pow, axis=1, keepdims=True) + 1e-16)
    read = jnp.einsum('bn,bnm->bm', w, memory)
    return read, w


if __name__ == "__main__":
    B, C = 16, 32          # batch, controller_size
    N, M = 128, 16         # memory rows, memory width
    L = M + 1 + 1 + 3 + 1  # sum(read_lengths) = M + 6

    key = jax.random.PRNGKey(0)
    k_emb, k_w, k_b, k_mem, k_wp = jax.random.split(key, 5)

    embeddings = jax.random.normal(k_emb, (B, C), dtype=jnp.float32)

    # nn.init.xavier_uniform_(fc_read.weight, gain=1.4); weight is (L, C) in torch.
    bound = 1.4 * jnp.sqrt(6.0 / (C + L))
    fc_weight = jax.random.uniform(k_w, (L, C), minval=-bound, maxval=bound,
                                   dtype=jnp.float32)
    fc_bias = 0.01 * jax.random.normal(k_b, (L,), dtype=jnp.float32)

    # NTMMemory: mem_bias ~ U(-1/sqrt(N+M), 1/sqrt(N+M)), repeated over batch.
    stdev = 1.0 / jnp.sqrt(jnp.float32(N + M))
    mem_bias = jax.random.uniform(k_mem, (N, M), minval=-stdev, maxval=stdev,
                                  dtype=jnp.float32)
    memory = jnp.broadcast_to(mem_bias, (B, N, M)).copy()

    # w_prev: a valid attention weighting from a previous timestep.
    w_prev = jax.nn.softmax(jax.random.normal(k_wp, (B, N), dtype=jnp.float32), axis=1)

    read_exp, weights_exp = ntm_read_head_ref(embeddings, fc_weight, fc_bias,
                                              memory, w_prev)

    # Default path: single grid step (best for single-TC v5e/v6e at this size).
    read, weights = ntm_read_head(embeddings, fc_weight, fc_bias, memory, w_prev)
    jax.block_until_ready((read, weights))
    assert read.shape == (B, M) and weights.shape == (B, N)
    assert jnp.allclose(read, read_exp, atol=2e-4, rtol=2e-3)
    assert jnp.allclose(weights, weights_exp, atol=2e-4, rtol=2e-3)
    assert jnp.allclose(jnp.sum(weights, axis=1), 1.0, atol=1e-3)

    # Tiled path (what you'd use on dual-TC v7x / large B): 2 parallel batch tiles.
    read2, weights2 = ntm_read_head(embeddings, fc_weight, fc_bias, memory, w_prev,
                                    batch_tile=8)
    jax.block_until_ready((read2, weights2))
    assert jnp.allclose(read2, read_exp, atol=2e-4, rtol=2e-3)
    assert jnp.allclose(weights2, weights_exp, atol=2e-4, rtol=2e-3)

    print("KERNEL_OK")
</pallas_src>

<mosaic_0001>
module attributes {stable_mosaic.version = 11 : i64} {
  func.func @ntm_read_head_kernel(%arg0: i32, %arg1: memref<16x32xf32, #tpu.memory_space<vmem>>, %arg2: memref<32x128xf32, #tpu.memory_space<vmem>>, %arg3: memref<1x128xf32, #tpu.memory_space<vmem>>, %arg4: memref<16x16x128xf32, #tpu.memory_space<vmem>>, %arg5: memref<16x128xf32, #tpu.memory_space<vmem>>, %arg6: memref<16x128xf32, #tpu.memory_space<vmem>>, %arg7: memref<16x128xf32, #tpu.memory_space<vmem>>) attributes {dimension_semantics = [#tpu.dimension_semantics<parallel>], iteration_bounds = array<i64: 1>, scalar_prefetch = 0 : i64, scratch_operands = 0 : i64, tpu.core_type = #tpu.core_type<tc>, window_params = [{transform_indices = @transform_0, window_bounds = array<i64: 16, 32>}, {pipeline_mode = #tpu.pipeline_mode<synchronous>, transform_indices = @transform_1, window_bounds = array<i64: 32, 128>}, {pipeline_mode = #tpu.pipeline_mode<synchronous>, transform_indices = @transform_2, window_bounds = array<i64: 1, 128>}, {transform_indices = @transform_3, window_bounds = array<i64: 16, 16, 128>}, {transform_indices = @transform_4, window_bounds = array<i64: 16, 128>}, {transform_indices = @transform_5, window_bounds = array<i64: 16, 128>}, {transform_indices = @transform_6, window_bounds = array<i64: 16, 128>}]} {
    %c0 = arith.constant 0 : index
    %c0_0 = arith.constant 0 : index
    %0 = vector.load %arg1[%c0, %c0_0] : memref<16x32xf32, #tpu.memory_space<vmem>>, vector<16x32xf32>
    %c0_1 = arith.constant 0 : index
    %c0_2 = arith.constant 0 : index
    %c0_3 = arith.constant 0 : index
    %1 = vector.load %arg4[%c0_1, %c0_2, %c0_3] : memref<16x16x128xf32, #tpu.memory_space<vmem>>, vector<16x16x128xf32>
    %c0_4 = arith.constant 0 : index
    %c0_5 = arith.constant 0 : index
    %2 = vector.load %arg5[%c0_4, %c0_5] : memref<16x128xf32, #tpu.memory_space<vmem>>, vector<16x128xf32>
    %c0_6 = arith.constant 0 : index
    %c0_7 = arith.constant 0 : index
    %3 = vector.load %arg2[%c0_6, %c0_7] : memref<32x128xf32, #tpu.memory_space<vmem>>, vector<32x128xf32>
    %cst = arith.constant dense<0.000000e+00> : vector<16x128xf32>
    %4 = tpu.matmul %0, %3, %cst {dimension_numbers = #tpu.dot_dimension_numbers<[1], [0], [0], [1], [0, 0, 1, 1], [], []>} : vector<16x32xf32>, vector<32x128xf32>, vector<16x128xf32> -> vector<16x128xf32>
    %c0_8 = arith.constant 0 : index
    %c0_9 = arith.constant 0 : index
    %5 = vector.load %arg3[%c0_8, %c0_9] : memref<1x128xf32, #tpu.memory_space<vmem>>, vector<1x128xf32>
    %6 = vector.broadcast %5 : vector<1x128xf32> to vector<16x128xf32>
    %7 = arith.addf %4, %6 : vector<16x128xf32>
    %8 = vector.extract_strided_slice %7 {offsets = [0, 0], sizes = [16, 16], strides = [1, 1]} : vector<16x128xf32> to vector<16x16xf32>
    %9 = vector.extract_strided_slice %7 {offsets = [0, 16], sizes = [16, 1], strides = [1, 1]} : vector<16x128xf32> to vector<16x1xf32>
    %cst_10 = arith.constant 0.000000e+00 : f32
    %10 = vector.broadcast %cst_10 : f32 to vector<16x1xf32>
    %11 = arith.maximumf %9, %10 : vector<16x1xf32>
    %12 = math.absf %9 : vector<16x1xf32>
    %cst_11 = arith.constant 0.000000e+00 : f32
    %13 = vector.broadcast %cst_11 : f32 to vector<16x1xf32>
    %14 = arith.subf %13, %12 : vector<16x1xf32>
    %15 = math.exp %14 : vector<16x1xf32>
    %cst_12 = arith.constant 1.000000e+00 : f32
    %16 = vector.broadcast %cst_12 : f32 to vector<16x1xf32>
    %17 = arith.addf %16, %15 : vector<16x1xf32>
    %18 = math.log %17 : vector<16x1xf32>
    %19 = arith.addf %11, %18 : vector<16x1xf32>
    %20 = vector.extract_strided_slice %7 {offsets = [0, 17], sizes = [16, 1], strides = [1, 1]} : vector<16x128xf32> to vector<16x1xf32>
    %cst_13 = arith.constant 0.000000e+00 : f32
    %21 = vector.broadcast %cst_13 : f32 to vector<16x1xf32>
    %22 = arith.subf %21, %20 : vector<16x1xf32>
    %23 = math.exp %22 : vector<16x1xf32>
    %cst_14 = arith.constant 1.000000e+00 : f32
    %24 = vector.broadcast %cst_14 : f32 to vector<16x1xf32>
    %25 = arith.addf %24, %23 : vector<16x1xf32>
    %cst_15 = arith.constant 1.000000e+00 : f32
    %26 = vector.broadcast %cst_15 : f32 to vector<16x1xf32>
    %27 = arith.divf %26, %25 : vector<16x1xf32>
    %28 = vector.extract_strided_slice %7 {offsets = [0, 18], sizes = [16, 3], strides = [1, 1]} : vector<16x128xf32> to vector<16x3xf32>
    %29 = vector.extract_strided_slice %7 {offsets = [0, 21], sizes = [16, 1], strides = [1, 1]} : vector<16x128xf32> to vector<16x1xf32>
    %cst_16 = arith.constant 0.000000e+00 : f32
    %30 = vector.broadcast %cst_16 : f32 to vector<16x1xf32>
    %31 = arith.maximumf %29, %30 : vector<16x1xf32>
    %32 = math.absf %29 : vector<16x1xf32>
    %cst_17 = arith.constant 0.000000e+00 : f32
    %33 = vector.broadcast %cst_17 : f32 to vector<16x1xf32>
    %34 = arith.subf %33, %32 : vector<16x1xf32>
    %35 = math.exp %34 : vector<16x1xf32>
    %cst_18 = arith.constant 1.000000e+00 : f32
    %36 = vector.broadcast %cst_18 : f32 to vector<16x1xf32>
    %37 = arith.addf %36, %35 : vector<16x1xf32>
    %38 = math.log %37 : vector<16x1xf32>
    %39 = arith.addf %31, %38 : vector<16x1xf32>
    %cst_19 = arith.constant 1.000000e+00 : f32
    %40 = vector.broadcast %cst_19 : f32 to vector<16x1xf32>
    %41 = arith.addf %40, %39 : vector<16x1xf32>
    %cst_20 = arith.constant dense<0xFF800000> : vector<16xf32>
    %42 = vector.multi_reduction <maximumf>, %28, %cst_20 [1] : vector<16x3xf32> to vector<16xf32>
    %43 = vector.shape_cast %42 : vector<16xf32> to vector<16x1xf32>
    %44 = vector.broadcast %43 : vector<16x1xf32> to vector<16x3xf32>
    %45 = arith.subf %28, %44 : vector<16x3xf32>
    %46 = math.exp %45 : vector<16x3xf32>
    %cst_21 = arith.constant dense<0.000000e+00> : vector<16xf32>
    %47 = vector.multi_reduction <add>, %46, %cst_21 [1] : vector<16x3xf32> to vector<16xf32>
    %48 = vector.shape_cast %47 : vector<16xf32> to vector<16x1xf32>
    %49 = vector.broadcast %48 : vector<16x1xf32> to vector<16x3xf32>
    %50 = arith.divf %46, %49 : vector<16x3xf32>
    %51 = vector.shape_cast %8 : vector<16x16xf32> to vector<16x16x1xf32>
    %52 = vector.broadcast %51 : vector<16x16x1xf32> to vector<16x16x128xf32>
    %53 = arith.mulf %1, %52 : vector<16x16x128xf32>
    %cst_22 = arith.constant dense<0.000000e+00> : vector<16x128xf32>
    %54 = vector.multi_reduction <add>, %53, %cst_22 [1] : vector<16x16x128xf32> to vector<16x128xf32>
    %55 = arith.mulf %1, %1 : vector<16x16x128xf32>
    %cst_23 = arith.constant dense<0.000000e+00> : vector<16x128xf32>
    %56 = vector.multi_reduction <add>, %55, %cst_23 [1] : vector<16x16x128xf32> to vector<16x128xf32>
    %57 = arith.mulf %8, %8 : vector<16x16xf32>
    %cst_24 = arith.constant dense<0.000000e+00> : vector<16xf32>
    %58 = vector.multi_reduction <add>, %57, %cst_24 [1] : vector<16x16xf32> to vector<16xf32>
    %59 = vector.shape_cast %58 : vector<16xf32> to vector<16x1xf32>
    %cst_25 = arith.constant 1.000000e-16 : f32
    %60 = vector.broadcast %cst_25 : f32 to vector<16x128xf32>
    %61 = arith.maximumf %56, %60 : vector<16x128xf32>
    %62 = math.rsqrt %61 : vector<16x128xf32>
    %cst_26 = arith.constant 1.000000e-16 : f32
    %63 = vector.broadcast %cst_26 : f32 to vector<16x1xf32>
    %64 = arith.maximumf %59, %63 : vector<16x1xf32>
    %65 = math.rsqrt %64 : vector<16x1xf32>
    %66 = vector.broadcast %65 : vector<16x1xf32> to vector<16x128xf32>
    %67 = arith.mulf %62, %66 : vector<16x128xf32>
    %68 = arith.mulf %54, %67 : vector<16x128xf32>
    %69 = vector.broadcast %19 : vector<16x1xf32> to vector<16x128xf32>
    %70 = arith.mulf %69, %68 : vector<16x128xf32>
    %cst_27 = arith.constant dense<0xFF800000> : vector<16xf32>
    %71 = vector.multi_reduction <maximumf>, %70, %cst_27 [1] : vector<16x128xf32> to vector<16xf32>
    %72 = vector.shape_cast %71 : vector<16xf32> to vector<16x1xf32>
    %73 = vector.broadcast %72 : vector<16x1xf32> to vector<16x128xf32>
    %74 = arith.subf %70, %73 : vector<16x128xf32>
    %75 = math.exp %74 : vector<16x128xf32>
    %cst_28 = arith.constant dense<0.000000e+00> : vector<16xf32>
    %76 = vector.multi_reduction <add>, %75, %cst_28 [1] : vector<16x128xf32> to vector<16xf32>
    %77 = vector.shape_cast %76 : vector<16xf32> to vector<16x1xf32>
    %78 = vector.broadcast %77 : vector<16x1xf32> to vector<16x128xf32>
    %79 = arith.divf %75, %78 : vector<16x128xf32>
    %80 = vector.broadcast %27 : vector<16x1xf32> to vector<16x128xf32>
    %81 = arith.mulf %80, %79 : vector<16x128xf32>
    %cst_29 = arith.constant 1.000000e+00 : f32
    %82 = vector.broadcast %cst_29 : f32 to vector<16x1xf32>
    %83 = arith.subf %82, %27 : vector<16x1xf32>
    %84 = vector.broadcast %83 : vector<16x1xf32> to vector<16x128xf32>
    %85 = arith.mulf %84, %2 : vector<16x128xf32>
    %86 = arith.addf %81, %85 : vector<16x128xf32>
    %87 = vector.extract_strided_slice %86 {offsets = [0, 127], sizes = [16, 1], strides = [1, 1]} : vector<16x128xf32> to vector<16x1xf32>
    %88 = vector.extract_strided_slice %86 {offsets = [0, 0], sizes = [16, 127], strides = [1, 1]} : vector<16x128xf32> to vector<16x127xf32>
    %89 = tpu.concatenate %87, %88 in 1 : vector<16x1xf32>, vector<16x127xf32> -> vector<16x128xf32>
    %90 = vector.extract_strided_slice %86 {offsets = [0, 1], sizes = [16, 127], strides = [1, 1]} : vector<16x128xf32> to vector<16x127xf32>
    %91 = vector.extract_strided_slice %86 {offsets = [0, 0], sizes = [16, 1], strides = [1, 1]} : vector<16x128xf32> to vector<16x1xf32>
    %92 = tpu.concatenate %90, %91 in 1 : vector<16x127xf32>, vector<16x1xf32> -> vector<16x128xf32>
    %93 = vector.extract_strided_slice %50 {offsets = [0, 0], sizes = [16, 1], strides = [1, 1]} : vector<16x3xf32> to vector<16x1xf32>
    %94 = vector.broadcast %93 : vector<16x1xf32> to vector<16x128xf32>
    %95 = arith.mulf %94, %89 : vector<16x128xf32>
    %96 = vector.extract_strided_slice %50 {offsets = [0, 1], sizes = [16, 1], strides = [1, 1]} : vector<16x3xf32> to vector<16x1xf32>
    %97 = vector.broadcast %96 : vector<16x1xf32> to vector<16x128xf32>
    %98 = arith.mulf %97, %86 : vector<16x128xf32>
    %99 = arith.addf %95, %98 : vector<16x128xf32>
    %100 = vector.extract_strided_slice %50 {offsets = [0, 2], sizes = [16, 1], strides = [1, 1]} : vector<16x3xf32> to vector<16x1xf32>
    %101 = vector.broadcast %100 : vector<16x1xf32> to vector<16x128xf32>
    %102 = arith.mulf %101, %92 : vector<16x128xf32>
    %103 = arith.addf %99, %102 : vector<16x128xf32>
    %cst_30 = arith.constant 9.99999935E-39 : f32
    %104 = vector.broadcast %cst_30 : f32 to vector<16x128xf32>
    %105 = arith.maximumf %103, %104 : vector<16x128xf32>
    %106 = math.log %105 : vector<16x128xf32>
    %107 = vector.broadcast %41 : vector<16x1xf32> to vector<16x128xf32>
    %108 = arith.mulf %107, %106 : vector<16x128xf32>
    %109 = math.exp %108 : vector<16x128xf32>
    %cst_31 = arith.constant dense<0.000000e+00> : vector<16xf32>
    %110 = vector.multi_reduction <add>, %109, %cst_31 [1] : vector<16x128xf32> to vector<16xf32>
    %111 = vector.shape_cast %110 : vector<16xf32> to vector<16x1xf32>
    %cst_32 = arith.constant 1.000000e-16 : f32
    %112 = vector.broadcast %cst_32 : f32 to vector<16x1xf32>
    %113 = arith.addf %111, %112 : vector<16x1xf32>
    %114 = vector.broadcast %113 : vector<16x1xf32> to vector<16x128xf32>
    %115 = arith.divf %109, %114 : vector<16x128xf32>
    %116 = vector.shape_cast %115 : vector<16x128xf32> to vector<16x1x128xf32>
    %117 = vector.broadcast %116 : vector<16x1x128xf32> to vector<16x16x128xf32>
    %118 = arith.mulf %1, %117 : vector<16x16x128xf32>
    %cst_33 = arith.constant dense<0.000000e+00> : vector<16x16xf32>
    %119 = vector.multi_reduction <add>, %118, %cst_33 [2] : vector<16x16x128xf32> to vector<16x16xf32>
    %cst_34 = arith.constant 0.000000e+00 : f32
    %120 = vector.broadcast %cst_34 : f32 to vector<16x112xf32>
    %121 = tpu.concatenate %119, %120 in 1 : vector<16x16xf32>, vector<16x112xf32> -> vector<16x128xf32>
    %c0_35 = arith.constant 0 : index
    %c0_36 = arith.constant 0 : index
    %122 = vector.load %arg7[%c0_35, %c0_36] : memref<16x128xf32, #tpu.memory_space<vmem>>, vector<16x128xf32>
    tpu.vector_store %arg7[%c0_35, %c0_36], %115 {strides = array<i32>} : memref<16x128xf32, #tpu.memory_space<vmem>>, vector<16x128xf32>,
    %c0_37 = arith.constant 0 : index
    %c0_38 = arith.constant 0 : index
    %123 = vector.load %arg6[%c0_37, %c0_38] : memref<16x128xf32, #tpu.memory_space<vmem>>, vector<16x128xf32>
    tpu.vector_store %arg6[%c0_37, %c0_38], %121 {strides = array<i32>} : memref<16x128xf32, #tpu.memory_space<vmem>>, vector<16x128xf32>,
    return
  }
  func.func @transform_0(%arg0: i32) -> (i32, i32) {
    %c0_i32 = arith.constant 0 : i32
    %c0_i32_0 = arith.constant 0 : i32
    return %arg0, %c0_i32 : i32, i32
  }
  func.func @transform_1(%arg0: i32) -> (i32, i32) {
    %c0_i32 = arith.constant 0 : i32
    %c0_i32_0 = arith.constant 0 : i32
    %c0_i32_1 = arith.constant 0 : i32
    return %c0_i32, %c0_i32_0 : i32, i32
  }
  func.func @transform_2(%arg0: i32) -> (i32, i32) {
    %c0_i32 = arith.constant 0 : i32
    %c0_i32_0 = arith.constant 0 : i32
    %c0_i32_1 = arith.constant 0 : i32
    return %c0_i32, %c0_i32_0 : i32, i32
  }
  func.func @transform_3(%arg0: i32) -> (i32, i32, i32) {
    %c0_i32 = arith.constant 0 : i32
    %c0_i32_0 = arith.constant 0 : i32
    %c0_i32_1 = arith.constant 0 : i32
    return %arg0, %c0_i32, %c0_i32_0 : i32, i32, i32
  }
  func.func @transform_4(%arg0: i32) -> (i32, i32) {
    %c0_i32 = arith.constant 0 : i32
    %c0_i32_0 = arith.constant 0 : i32
    return %arg0, %c0_i32 : i32, i32
  }
  func.func @transform_5(%arg0: i32) -> (i32, i32) {
    %c0_i32 = arith.constant 0 : i32
    %c0_i32_0 = arith.constant 0 : i32
    return %arg0, %c0_i32 : i32, i32
  }
  func.func @transform_6(%arg0: i32) -> (i32, i32) {
    %c0_i32 = arith.constant 0 : i32
    %c0_i32_0 = arith.constant 0 : i32
    return %arg0, %c0_i32 : i32, i32
  }
}

</mosaic_0001>

<llo_original>
// kernel: tpu_custom_call.1
$region0: #{tpu_custom_call.1}
  #allocation0 [shape = 'u32[]', space=smem, size = 0x4, offset = 0x4, fixed_abs, tag = 'smem constant byte address 0x4 - core index']
  #allocation1 [shape = 'u32[144,128]{1,0:T(1,128)}', space=vmem, size = 0x12000, scoped, tag = 'internal scratch']
  %s0 = inlined_call_operand.hbm [shape: f32[16,32], index: 0, kind: input, shape index: {}]
  %s1 = inlined_call_operand.hbm [shape: f32[32,128], index: 1, kind: input, shape index: {}]
  %s2 = inlined_call_operand.vmem [shape: f32[1,128], index: 2, kind: input, shape index: {}]
  %s3 = inlined_call_operand.hbm [shape: f32[16,16,128], index: 3, kind: input, shape index: {}]
  %s4 = inlined_call_operand.hbm [shape: f32[16,128], index: 4, kind: input, shape index: {}]
  %s5 = inlined_call_operand.hbm [shape: f32[16,128], index: 5, kind: output, shape index: {0}]
  %s6 = inlined_call_operand.hbm [shape: f32[16,128], index: 6, kind: output, shape index: {1}]
  %7 = xla_tuple %s5, %s6
  %s8 = sld [smem:[#allocation0]]
  $region54: #{tpu_custom_call.1} parent=0
    _
  %s10 = ssub.s32 1, %s8
  %s11 = scalar_select 0, %s10, %s8
  $region1: #{tpu_custom_call.1} parent=0
    #allocation2 [shape = 'u8[8192]{0}', space=vmem, size = 0x2000, scoped, tag = 'input window, operand 0, single buffered']
    #allocation3 [shape = 's32[1]{0}', space=sflag, size = 0x4, scoped, tag = 'scoped memory for tpu_custom_call.1']
    #allocation4 [shape = 's32[1]{0}', space=sflag, size = 0x4, scoped, tag = 'scoped memory for tpu_custom_call.1']
    #allocation5 [shape = 'u8[16384]{0}', space=vmem, size = 0x4000, scoped, tag = 'input window, operand 1, single buffered']
    #allocation6 [shape = 's32[1]{0}', space=sflag, size = 0x4, scoped, tag = 'scoped memory for tpu_custom_call.1']
    #allocation7 [shape = 'u8[131072]{0}', space=vmem, size = 0x20000, scoped, tag = 'input window, operand 3, single buffered']
    #allocation8 [shape = 'u8[8192]{0}', space=vmem, size = 0x2000, scoped, tag = 'input window, operand 4, single buffered']
    #allocation9 [shape = 's32[1]{0}', space=sflag, size = 0x4, scoped, tag = 'scoped memory for tpu_custom_call.1']
    #allocation10 [shape = 'u8[8192]{0}', space=vmem, size = 0x2000, scoped, tag = 'output window, operand 0, single buffered']
    #allocation11 [shape = 'u8[8192]{0}', space=vmem, size = 0x2000, scoped, tag = 'output window, operand 1, single buffered']
    #allocation12 [shape = 's32[1]{0}', space=sflag, size = 0x4, scoped, tag = 'scoped memory for tpu_custom_call.1']
    %12 = vsyncpa [#allocation3], 0
    %13 = vsyncpa [#allocation6], 0
    %14 = vsyncpa [#allocation9], 0
    %15 = vsyncpa [#allocation4], 0
    %16 = vsyncpa [#allocation12], 0
    // Predicated region
    $region2: #{tpu_custom_call.1} parent=1 // pred_check
      _
    $region3: #{tpu_custom_call.1} parent=1 // pred_check_branch
      %18 = sbr.rel (0) target = $region5
    $region4: #{tpu_custom_call.1} parent=1 // pred_region
      %s20 = ssub.s32 256, 256
      %21 = vsyncadd [#allocation3], %s20
      %s22 = sshll.u32 [#allocation2], 4
      %s23 = int_to_ptr.vmem [resolvable:$true] %s22
      %28 = dma.hbm_to_vmem [thread:$0]  %s0, 256, %s23, [#allocation3], 128, 128, 8
    $region5: #{tpu_custom_call.1} parent=1 // pred_fallthru
      _
    // Predicated region
    $region6: #{tpu_custom_call.1} parent=1 // pred_check
      _
    $region7: #{tpu_custom_call.1} parent=1 // pred_check_branch
      %30 = sbr.rel (0) target = $region9
    $region8: #{tpu_custom_call.1} parent=1 // pred_region
      %s32 = ssub.s32 512, 512
      %33 = vsyncadd [#allocation6], %s32
      %s34 = sshll.u32 [#allocation5], 4
      %s35 = int_to_ptr.vmem [resolvable:$true] %s34
      %40 = dma.hbm_to_vmem [thread:$0]  %s1, 512, %s35, [#allocation6], 128, 128, 8
    $region9: #{tpu_custom_call.1} parent=1 // pred_fallthru
      _
    // Predicated region
    $region10: #{tpu_custom_call.1} parent=1 // pred_check
      _
    $region11: #{tpu_custom_call.1} parent=1 // pred_check_branch
      %42 = sbr.rel (0) target = $region13
    $region12: #{tpu_custom_call.1} parent=1 // pred_region
      _
    $region13: #{tpu_custom_call.1} parent=1 // pred_fallthru
      _
    // Predicated region
    $region14: #{tpu_custom_call.1} parent=1 // pred_check
      _
    $region15: #{tpu_custom_call.1} parent=1 // pred_check_branch
      %44 = sbr.rel (0) target = $region17
    $region16: #{tpu_custom_call.1} parent=1 // pred_region
      %s46 = ssub.s32 4096, 4096
      %47 = vsyncadd [#allocation6], %s46
      %s48 = sshll.u32 [#allocation7], 4
      %s49 = int_to_ptr.vmem [resolvable:$true] %s48
      %54 = dma.hbm_to_vmem [thread:$0]  %s3, 4096, %s49, [#allocation6], 128, 128, 8
    $region17: #{tpu_custom_call.1} parent=1 // pred_fallthru
      _
    // Predicated region
    $region18: #{tpu_custom_call.1} parent=1 // pred_check
      _
    $region19: #{tpu_custom_call.1} parent=1 // pred_check_branch
      %56 = sbr.rel (0) target = $region21
    $region20: #{tpu_custom_call.1} parent=1 // pred_region
      %s58 = ssub.s32 256, 256
      %59 = vsyncadd [#allocation9], %s58
      %s60 = sshll.u32 [#allocation8], 4
      %s61 = int_to_ptr.vmem [resolvable:$true] %s60
      %66 = dma.hbm_to_vmem [thread:$0]  %s4, 256, %s61, [#allocation9], 128, 128, 8
    $region21: #{tpu_custom_call.1} parent=1 // pred_fallthru
      _
    // Predicated region
    $region22: #{tpu_custom_call.1} parent=1 // pred_check
      _
    $region23: #{tpu_custom_call.1} parent=1 // pred_check_branch
      %68 = sbr.rel (0) target = $region25
    $region24: #{tpu_custom_call.1} parent=1 // pred_region
      %69 = dma.done [#allocation3], 256
    $region25: #{tpu_custom_call.1} parent=1 // pred_fallthru
      _
    // Predicated region
    $region26: #{tpu_custom_call.1} parent=1 // pred_check
      _
    $region27: #{tpu_custom_call.1} parent=1 // pred_check_branch
      %71 = sbr.rel (0) target = $region29
    $region28: #{tpu_custom_call.1} parent=1 // pred_region
      %72 = dma.done [#allocation6], 512
    $region29: #{tpu_custom_call.1} parent=1 // pred_fallthru
      _
    // Predicated region
    $region30: #{tpu_custom_call.1} parent=1 // pred_check
      _
    $region31: #{tpu_custom_call.1} parent=1 // pred_check_branch
      %74 = sbr.rel (0) target = $region33
    $region32: #{tpu_custom_call.1} parent=1 // pred_region
      %75 = dma.done [#allocation6], 4096
    $region33: #{tpu_custom_call.1} parent=1 // pred_fallthru
      _
    // Predicated region
    $region34: #{tpu_custom_call.1} parent=1 // pred_check
      _
    $region35: #{tpu_custom_call.1} parent=1 // pred_check_branch
      %77 = sbr.rel (0) target = $region37
    $region36: #{tpu_custom_call.1} parent=1 // pred_region
      %78 = dma.done [#allocation9], 256
    $region37: #{tpu_custom_call.1} parent=1 // pred_fallthru
      _
    %v79 = vld [vmem:[#allocation2] sm:$0xff]
    %v80 = vld [vmem:[#allocation2 + $0x8] sm:$0xff]
    %v81 = vld [vmem:[#allocation7] sm:$0xff]
    %v82 = vld [vmem:[#allocation7 + $0x8] sm:$0xff]
    %v83 = vld [vmem:[#allocation7 + $0x10] sm:$0xff]
    %v84 = vld [vmem:[#allocation7 + $0x18] sm:$0xff]
    %v85 = vld [vmem:[#allocation7 + $0x20] sm:$0xff]
    %v86 = vld [vmem:[#allocation7 + $0x28] sm:$0xff]
    %v87 = vld [vmem:[#allocation7 + $0x30] sm:$0xff]
    %v88 = vld [vmem:[#allocation7 + $0x38] sm:$0xff]
    %v89 = vld [vmem:[#allocation7 + $0x40] sm:$0xff]
    %v90 = vld [vmem:[#allocation7 + $0x48] sm:$0xff]
    %v91 = vld [vmem:[#allocation7 + $0x50] sm:$0xff]
    %v92 = vld [vmem:[#allocation7 + $0x58] sm:$0xff]
    %v93 = vld [vmem:[#allocation7 + $0x60] sm:$0xff]
    %v94 = vld [vmem:[#allocation7 + $0x68] sm:$0xff]
    %v95 = vld [vmem:[#allocation7 + $0x70] sm:$0xff]
    %v96 = vld [vmem:[#allocation7 + $0x78] sm:$0xff]
    %v97 = vld [vmem:[#allocation7 + $0x80] sm:$0xff]
    %v98 = vld [vmem:[#allocation7 + $0x88] sm:$0xff]
    %v99 = vld [vmem:[#allocation7 + $0x90] sm:$0xff]
    %v100 = vld [vmem:[#allocation7 + $0x98] sm:$0xff]
    %v101 = vld [vmem:[#allocation7 + $0xa0] sm:$0xff]
    %v102 = vld [vmem:[#allocation7 + $0xa8] sm:$0xff]
    %v103 = vld [vmem:[#allocation7 + $0xb0] sm:$0xff]
    %v104 = vld [vmem:[#allocation7 + $0xb8] sm:$0xff]
    %v105 = vld [vmem:[#allocation7 + $0xc0] sm:$0xff]
    %v106 = vld [vmem:[#allocation7 + $0xc8] sm:$0xff]
    %v107 = vld [vmem:[#allocation7 + $0xd0] sm:$0xff]
    %v108 = vld [vmem:[#allocation7 + $0xd8] sm:$0xff]
    %v109 = vld [vmem:[#allocation7 + $0xe0] sm:$0xff]
    %v110 = vld [vmem:[#allocation7 + $0xe8] sm:$0xff]
    %v111 = vld [vmem:[#allocation7 + $0xf0] sm:$0xff]
    %v112 = vld [vmem:[#allocation7 + $0xf8] sm:$0xff]
    %v113 = vld [vmem:[#allocation8] sm:$0xff]
    %v114 = vld [vmem:[#allocation8 + $0x8] sm:$0xff]
    %v115 = vld [vmem:[#allocation5] sm:$0xff]
    %v116 = vld [vmem:[#allocation5 + $0x8] sm:$0xff]
    %v117 = vld [vmem:[#allocation5 + $0x10] sm:$0xff]
    %v118 = vld [vmem:[#allocation5 + $0x18] sm:$0xff]
    %v119 = vld [vmem:[%s2] sm:$0x1]
    %v121 = vlaneseq
    %v122 = vshrl.u32 %v121, 7
    %v123 = vsub.s32 0, %v122
    %v124 = vrot.slane %v119, %v123
    %vm126 = vcmask 261120
    %v128 = vsel %vm126, %v79, 0
    %v131 = vsel %vm126, %v80, 0
    %133 = vmatprep.subr.mxu0 0.0
    %134 = vmatpush1.msra.mxu0 0.0
    %135 = vmatprep.subr.mxu0 0.0
    %136 = vmatpush1.msra.mxu0 0.0
    %137 = vmatprep.subr.mxu0 0.0
    %138 = vmatpush1.msra.mxu0 0.0
    %139 = vmatprep.subr.mxu0 0.0
    %140 = vmatpush1.msra.mxu0 0.0
    %141 = vmatprep.subr.mxu0 0.0
    %142 = vmatpush1.msra.mxu0 0.0
    %143 = vmatprep.subr.mxu0 0.0
    %144 = vmatpush1.msra.mxu0 0.0
    %145 = vmatprep.subr.mxu0 0.0
    %146 = vmatpush1.msra.mxu0 0.0
    %147 = vmatprep.subr.mxu0 0.0
    %148 = vmatpush1.msra.mxu0 0.0
    %149 = vmatprep.subr.mxu0 0.0
    %150 = vmatpush1.msra.mxu0 0.0
    %151 = vmatprep.subr.mxu0 0.0
    %152 = vmatpush1.msra.mxu0 0.0
    %153 = vmatprep.subr.mxu0 0.0
    %154 = vmatpush1.msra.mxu0 0.0
    %155 = vmatprep.subr.mxu0 0.0
    %156 = vmatpush1.msra.mxu0 0.0
    %157 = vmatprep.subr.mxu0 0.0
    %158 = vmatpush1.msra.mxu0 %v118
    %159 = vmatprep.subr.mxu0 0.0
    %160 = vmatpush1.msra.mxu0 %v117
    %161 = vmatprep.subr.mxu0 0.0
    %162 = vmatpush1.msra.mxu0 %v116
    %163 = vmatprep.subr.mxu0 0.0
    %164 = vmatpush1.msra.mxu0 %v115
    %165 = vmatprep.subr.mxu0 0.0
    %166 = vmatpush2.msra.mxu0 0.0
    %167 = vmatprep.subr.mxu0 0.0
    %168 = vmatpush2.msra.mxu0 0.0
    %169 = vmatprep.subr.mxu0 0.0
    %170 = vmatpush2.msra.mxu0 0.0
    %171 = vmatprep.subr.mxu0 0.0
    %172 = vmatpush2.msra.mxu0 0.0
    %173 = vmatprep.subr.mxu0 0.0
    %174 = vmatpush2.msra.mxu0 0.0
    %175 = vmatprep.subr.mxu0 0.0
    %176 = vmatpush2.msra.mxu0 0.0
    %177 = vmatprep.subr.mxu0 0.0
    %178 = vmatpush2.msra.mxu0 0.0
    %179 = vmatprep.subr.mxu0 0.0
    %180 = vmatpush2.msra.mxu0 0.0
    %181 = vmatprep.subr.mxu0 0.0
    %182 = vmatpush2.msra.mxu0 0.0
    %183 = vmatprep.subr.mxu0 0.0
    %184 = vmatpush2.msra.mxu0 0.0
    %185 = vmatprep.subr.mxu0 0.0
    %186 = vmatpush2.msra.mxu0 0.0
    %187 = vmatprep.subr.mxu0 0.0
    %188 = vmatpush2.msra.mxu0 0.0
    %189 = vmatprep.subr.mxu0 0.0
    %190 = vmatpush2.msra.mxu0 0.0
    %191 = vmatprep.subr.mxu0 0.0
    %192 = vmatpush2.msra.mxu0 0.0
    %193 = vmatprep.subr.mxu0 0.0
    %194 = vmatpush2.msra.mxu0 0.0
    %195 = vmatprep.subr.mxu0 0.0
    %196 = vmatpush2.msra.mxu0 0.0
    %197 = vmatprep.mubr.f32.mxu0 0.0
    %198 = vmatmul.mubr.f32.gmra.mxu0 %v128
    %v199 = vpop.f32.mrf.mxu0
    %v200 = vadd.f32 %v124, %v199
    %v201 = vpop.f32.mrf.mxu0
    %202 = vmatprep.mubr.f32.mxu0 0.0
    %203 = vmatmul.mubr.f32.gmra.mxu0 %v131
    %v204 = vpop.f32.mrf.mxu0
    %v205 = vadd.f32 %v124, %v204
    %v206 = vpop.f32.mrf.mxu0
    %207 = vdwg.mxu0
    %v208 = vmax.f32 %v200, 0.0
    %v209 = vmax.f32 %v205, 0.0
    %v210 = vand.u32 2147483647, %v200
    %v211 = vand.u32 2147483647, %v205
    %v212 = vsub.f32 0.0, %v210
    %v213 = vsub.f32 0.0, %v211
    %v214 = vmul.f32 %v212, 1.442695
    %v215 = vpow.pop %v214
    %v216 = vmul.f32 %v213, 1.442695
    %v217 = vpow.pop %v216
    %v218 = vadd.f32 %v215, 1.0
    %v219 = vadd.f32 %v217, 1.0
    %v220 = vlog2.pop %v218
    %v221 = vmul.f32 %v220, 0.6931472
    %v222 = vlog2.pop %v219
    %v223 = vmul.f32 %v222, 0.6931472
    %v224 = vadd.f32 %v208, %v221
    %v225 = vadd.f32 %v209, %v223
    %v226 = vsub.f32 0.0, %v200
    %v227 = vsub.f32 0.0, %v205
    %v228 = vmul.f32 %v226, 1.442695
    %v229 = vpow.pop %v228
    %v230 = vmul.f32 %v227, 1.442695
    %v231 = vpow.pop %v230
    %v232 = vadd.f32 %v229, 1.0
    %v233 = vadd.f32 %v231, 1.0
    %v234 = vrcp.pop %v232
    %v235 = vmul.f32 1.0, %v234
    %v236 = vrcp.pop %v233
    %v237 = vmul.f32 1.0, %v236
    %v238 = vadd.f32 %v224, 1.0
    %v239 = vadd.f32 %v225, 1.0
    %vm240 = vcmask 171152
    %v241 = vsel %vm240, %v200, -inf
    %242 = vmax.xlane.f32.xlu0 %v241
    %v243 = vpop.xlane.xlu0 %242
    %v244 = vsel %vm240, %v205, -inf
    %245 = vmax.xlane.f32.xlu0 %v244
    %v246 = vpop.xlane.xlu0 %245
    %v247 = vsub.f32 %v200, %v243
    %v248 = vsub.f32 %v205, %v246
    %v249 = vmul.f32 %v247, 1.442695
    %v250 = vpow.pop %v249
    %v251 = vmul.f32 %v248, 1.442695
    %v252 = vpow.pop %v251
    %255 = vrot.lane.b32.xlu0 %v250, 110
    %v256 = vpop.permute.xlu0 %255
    %257 = vrot.lane.b32.xlu0 %v252, 110
    %v258 = vpop.permute.xlu0 %257
    %vm261 = vcmask 23552
    %v262 = vsel %vm261, %v256, 0.0
    %263 = vadd.xlane.f32.xlu0 %v262
    %v264 = vpop.xlane.xlu0 %263
    %v265 = vsel %vm261, %v258, 0.0
    %266 = vadd.xlane.f32.xlu0 %v265
    %v267 = vpop.xlane.xlu0 %266
    %v268 = vrcp.pop %v264
    %v269 = vmul.f32 %v250, %v268
    %v270 = vrcp.pop %v267
    %v271 = vmul.f32 %v252, %v270
    %v272 = vlaneseq
    %v273 = vshrl.u32 %v272, 7
    %v274 = vsub.s32 0, %v273
    %v275 = vrot.slane %v200, %v274
    %277 = vbcast.lane.b32.xlu0 %v275, 256
    %v278 = vpop.permute.xlu0 %277
    %s280 = sor.u32 256, 8
    %281 = vbcast.lane.b32.xlu0 %v275, %s280
    %v282 = vpop.permute.xlu0 %281
    %v283 = vlaneseq
    %v284 = vshrl.u32 %v283, 7
    %v285 = vsub.s32 1, %v284
    %v286 = vrot.slane %v200, %v285
    %288 = vbcast.lane.b32.xlu0 %v286, 256
    %v289 = vpop.permute.xlu0 %288
    %s291 = sor.u32 256, 8
    %292 = vbcast.lane.b32.xlu0 %v286, %s291
    %v293 = vpop.permute.xlu0 %292
    %v294 = vlaneseq
    %v295 = vshrl.u32 %v294, 7
    %v296 = vsub.s32 2, %v295
    %v297 = vrot.slane %v200, %v296
    %299 = vbcast.lane.b32.xlu0 %v297, 256
    %v300 = vpop.permute.xlu0 %299
    %s302 = sor.u32 256, 8
    %303 = vbcast.lane.b32.xlu0 %v297, %s302
    %v304 = vpop.permute.xlu0 %303
    %v305 = vlaneseq
    %v306 = vshrl.u32 %v305, 7
    %v307 = vsub.s32 3, %v306
    %v308 = vrot.slane %v200, %v307
    %310 = vbcast.lane.b32.xlu0 %v308, 256
    %v311 = vpop.permute.xlu0 %310
    %s313 = sor.u32 256, 8
    %314 = vbcast.lane.b32.xlu0 %v308, %s313
    %v315 = vpop.permute.xlu0 %314
    %v316 = vlaneseq
    %v317 = vshrl.u32 %v316, 7
    %v318 = vsub.s32 4, %v317
    %v319 = vrot.slane %v200, %v318
    %321 = vbcast.lane.b32.xlu0 %v319, 256
    %v322 = vpop.permute.xlu0 %321
    %s324 = sor.u32 256, 8
    %325 = vbcast.lane.b32.xlu0 %v319, %s324
    %v326 = vpop.permute.xlu0 %325
    %v327 = vlaneseq
    %v328 = vshrl.u32 %v327, 7
    %v329 = vsub.s32 5, %v328
    %v330 = vrot.slane %v200, %v329
    %332 = vbcast.lane.b32.xlu0 %v330, 256
    %v333 = vpop.permute.xlu0 %332
    %s335 = sor.u32 256, 8
    %336 = vbcast.lane.b32.xlu0 %v330, %s335
    %v337 = vpop.permute.xlu0 %336
    %v338 = vlaneseq
    %v339 = vshrl.u32 %v338, 7
    %v340 = vsub.s32 6, %v339
    %v341 = vrot.slane %v200, %v340
    %343 = vbcast.lane.b32.xlu0 %v341, 256
    %v344 = vpop.permute.xlu0 %343
    %s346 = sor.u32 256, 8
    %347 = vbcast.lane.b32.xlu0 %v341, %s346
    %v348 = vpop.permute.xlu0 %347
    %v349 = vlaneseq
    %v350 = vshrl.u32 %v349, 7
    %v351 = vsub.s32 7, %v350
    %v352 = vrot.slane %v200, %v351
    %354 = vbcast.lane.b32.xlu0 %v352, 256
    %v355 = vpop.permute.xlu0 %354
    %s357 = sor.u32 256, 8
    %358 = vbcast.lane.b32.xlu0 %v352, %s357
    %v359 = vpop.permute.xlu0 %358
    %v360 = vlaneseq
    %v361 = vshrl.u32 %v360, 7
    %v362 = vsub.s32 0, %v361
    %v363 = vrot.slane %v205, %v362
    %365 = vbcast.lane.b32.xlu0 %v363, 256
    %v366 = vpop.permute.xlu0 %365
    %s368 = sor.u32 256, 8
    %369 = vbcast.lane.b32.xlu0 %v363, %s368
    %v370 = vpop.permute.xlu0 %369
    %v371 = vlaneseq
    %v372 = vshrl.u32 %v371, 7
    %v373 = vsub.s32 1, %v372
    %v374 = vrot.slane %v205, %v373
    %376 = vbcast.lane.b32.xlu0 %v374, 256
    %v377 = vpop.permute.xlu0 %376
    %s379 = sor.u32 256, 8
    %380 = vbcast.lane.b32.xlu0 %v374, %s379
    %v381 = vpop.permute.xlu0 %380
    %v382 = vlaneseq
    %v383 = vshrl.u32 %v382, 7
    %v384 = vsub.s32 2, %v383
    %v385 = vrot.slane %v205, %v384
    %387 = vbcast.lane.b32.xlu0 %v385, 256
    %v388 = vpop.permute.xlu0 %387
    %s390 = sor.u32 256, 8
    %391 = vbcast.lane.b32.xlu0 %v385, %s390
    %v392 = vpop.permute.xlu0 %391
    %v393 = vlaneseq
    %v394 = vshrl.u32 %v393, 7
    %v395 = vsub.s32 3, %v394
    %v396 = vrot.slane %v205, %v395
    %398 = vbcast.lane.b32.xlu0 %v396, 256
    %v399 = vpop.permute.xlu0 %398
    %s401 = sor.u32 256, 8
    %402 = vbcast.lane.b32.xlu0 %v396, %s401
    %v403 = vpop.permute.xlu0 %402
    %v404 = vlaneseq
    %v405 = vshrl.u32 %v404, 7
    %v406 = vsub.s32 4, %v405
    %v407 = vrot.slane %v205, %v406
    %409 = vbcast.lane.b32.xlu0 %v407, 256
    %v410 = vpop.permute.xlu0 %409
    %s412 = sor.u32 256, 8
    %413 = vbcast.lane.b32.xlu0 %v407, %s412
    %v414 = vpop.permute.xlu0 %413
    %v415 = vlaneseq
    %v416 = vshrl.u32 %v415, 7
    %v417 = vsub.s32 5, %v416
    %v418 = vrot.slane %v205, %v417
    %420 = vbcast.lane.b32.xlu0 %v418, 256
    %v421 = vpop.permute.xlu0 %420
    %s423 = sor.u32 256, 8
    %424 = vbcast.lane.b32.xlu0 %v418, %s423
    %v425 = vpop.permute.xlu0 %424
    %v426 = vlaneseq
    %v427 = vshrl.u32 %v426, 7
    %v428 = vsub.s32 6, %v427
    %v429 = vrot.slane %v205, %v428
    %431 = vbcast.lane.b32.xlu0 %v429, 256
    %v432 = vpop.permute.xlu0 %431
    %s434 = sor.u32 256, 8
    %435 = vbcast.lane.b32.xlu0 %v429, %s434
    %v436 = vpop.permute.xlu0 %435
    %v437 = vlaneseq
    %v438 = vshrl.u32 %v437, 7
    %v439 = vsub.s32 7, %v438
    %v440 = vrot.slane %v205, %v439
    %442 = vbcast.lane.b32.xlu0 %v440, 256
    %v443 = vpop.permute.xlu0 %442
    %s445 = sor.u32 256, 8
    %446 = vbcast.lane.b32.xlu0 %v440, %s445
    %v447 = vpop.permute.xlu0 %446
    %v448 = vmul.f32 %v81, %v278
    %v449 = vmul.f32 %v82, %v282
    %v450 = vmul.f32 %v83, %v289
    %v451 = vmul.f32 %v84, %v293
    %v452 = vmul.f32 %v85, %v300
    %v453 = vmul.f32 %v86, %v304
    %v454 = vmul.f32 %v87, %v311
    %v455 = vmul.f32 %v88, %v315
    %v456 = vmul.f32 %v89, %v322
    %v457 = vmul.f32 %v90, %v326
    %v458 = vmul.f32 %v91, %v333
    %v459 = vmul.f32 %v92, %v337
    %v460 = vmul.f32 %v93, %v344
    %v461 = vmul.f32 %v94, %v348
    %v462 = vmul.f32 %v95, %v355
    %v463 = vmul.f32 %v96, %v359
    %v464 = vmul.f32 %v97, %v366
    %v465 = vmul.f32 %v98, %v370
    %v466 = vmul.f32 %v99, %v377
    %v467 = vmul.f32 %v100, %v381
    %v468 = vmul.f32 %v101, %v388
    %v469 = vmul.f32 %v102, %v392
    %v470 = vmul.f32 %v103, %v399
    %v471 = vmul.f32 %v104, %v403
    %v472 = vmul.f32 %v105, %v410
    %v473 = vmul.f32 %v106, %v414
    %v474 = vmul.f32 %v107, %v421
    %v475 = vmul.f32 %v108, %v425
    %v476 = vmul.f32 %v109, %v432
    %v477 = vmul.f32 %v110, %v436
    %v478 = vmul.f32 %v111, %v443
    %v479 = vmul.f32 %v112, %v447
    %v480 = vadd.f32 %v448, %v449
    %v481 = vrot.slane %v480, 4
    %v482 = vadd.f32 %v480, %v481
    %v483 = vrot.slane %v482, 2
    %v484 = vadd.f32 %v482, %v483
    %v485 = vrot.slane %v484, 1
    %v486 = vadd.f32 %v484, %v485
    %v487 = vadd.f32 %v450, %v451
    %v488 = vrot.slane %v487, 4
    %v489 = vadd.f32 %v487, %v488
    %v490 = vrot.slane %v489, 2
    %v491 = vadd.f32 %v489, %v490
    %v492 = vrot.slane %v491, 1
    %v493 = vadd.f32 %v491, %v492
    %v494 = vadd.f32 %v452, %v453
    %v495 = vrot.slane %v494, 4
    %v496 = vadd.f32 %v494, %v495
    %v497 = vrot.slane %v496, 2
    %v498 = vadd.f32 %v496, %v497
    %v499 = vrot.slane %v498, 1
    %v500 = vadd.f32 %v498, %v499
    %v501 = vadd.f32 %v454, %v455
    %v502 = vrot.slane %v501, 4
    %v503 = vadd.f32 %v501, %v502
    %v504 = vrot.slane %v503, 2
    %v505 = vadd.f32 %v503, %v504
    %v506 = vrot.slane %v505, 1
    %v507 = vadd.f32 %v505, %v506
    %v508 = vadd.f32 %v456, %v457
    %v509 = vrot.slane %v508, 4
    %v510 = vadd.f32 %v508, %v509
    %v511 = vrot.slane %v510, 2
    %v512 = vadd.f32 %v510, %v511
    %v513 = vrot.slane %v512, 1
    %v514 = vadd.f32 %v512, %v513
    %v515 = vadd.f32 %v458, %v459
    %v516 = vrot.slane %v515, 4
    %v517 = vadd.f32 %v515, %v516
    %v518 = vrot.slane %v517, 2
    %v519 = vadd.f32 %v517, %v518
    %v520 = vrot.slane %v519, 1
    %v521 = vadd.f32 %v519, %v520
    %v522 = vadd.f32 %v460, %v461
    %v523 = vrot.slane %v522, 4
    %v524 = vadd.f32 %v522, %v523
    %v525 = vrot.slane %v524, 2
    %v526 = vadd.f32 %v524, %v525
    %v527 = vrot.slane %v526, 1
    %v528 = vadd.f32 %v526, %v527
    %v529 = vadd.f32 %v462, %v463
    %v530 = vrot.slane %v529, 4
    %v531 = vadd.f32 %v529, %v530
    %v532 = vrot.slane %v531, 2
    %v533 = vadd.f32 %v531, %v532
    %v534 = vrot.slane %v533, 1
    %v535 = vadd.f32 %v533, %v534
    %v536 = vadd.f32 %v464, %v465
    %v537 = vrot.slane %v536, 4
    %v538 = vadd.f32 %v536, %v537
    %v539 = vrot.slane %v538, 2
    %v540 = vadd.f32 %v538, %v539
    %v541 = vrot.slane %v540, 1
    %v542 = vadd.f32 %v540, %v541
    %v543 = vadd.f32 %v466, %v467
    %v544 = vrot.slane %v543, 4
    %v545 = vadd.f32 %v543, %v544
    %v546 = vrot.slane %v545, 2
    %v547 = vadd.f32 %v545, %v546
    %v548 = vrot.slane %v547, 1
    %v549 = vadd.f32 %v547, %v548
    %v550 = vadd.f32 %v468, %v469
    %v551 = vrot.slane %v550, 4
    %v552 = vadd.f32 %v550, %v551
    %v553 = vrot.slane %v552, 2
    %v554 = vadd.f32 %v552, %v553
    %v555 = vrot.slane %v554, 1
    %v556 = vadd.f32 %v554, %v555
    %v557 = vadd.f32 %v470, %v471
    %v558 = vrot.slane %v557, 4
    %v559 = vadd.f32 %v557, %v558
    %v560 = vrot.slane %v559, 2
    %v561 = vadd.f32 %v559, %v560
    %v562 = vrot.slane %v561, 1
    %v563 = vadd.f32 %v561, %v562
    %v564 = vadd.f32 %v472, %v473
    %v565 = vrot.slane %v564, 4
    %v566 = vadd.f32 %v564, %v565
    %v567 = vrot.slane %v566, 2
    %v568 = vadd.f32 %v566, %v567
    %v569 = vrot.slane %v568, 1
    %v570 = vadd.f32 %v568, %v569
    %v571 = vadd.f32 %v474, %v475
    %v572 = vrot.slane %v571, 4
    %v573 = vadd.f32 %v571, %v572
    %v574 = vrot.slane %v573, 2
    %v575 = vadd.f32 %v573, %v574
    %v576 = vrot.slane %v575, 1
    %v577 = vadd.f32 %v575, %v576
    %v578 = vadd.f32 %v476, %v477
    %v579 = vrot.slane %v578, 4
    %v580 = vadd.f32 %v578, %v579
    %v581 = vrot.slane %v580, 2
    %v582 = vadd.f32 %v580, %v581
    %v583 = vrot.slane %v582, 1
    %v584 = vadd.f32 %v582, %v583
    %v585 = vadd.f32 %v478, %v479
    %v586 = vrot.slane %v585, 4
    %v587 = vadd.f32 %v585, %v586
    %v588 = vrot.slane %v587, 2
    %v589 = vadd.f32 %v587, %v588
    %v590 = vrot.slane %v589, 1
    %v591 = vadd.f32 %v589, %v590
    %v592 = vmul.f32 %v81, %v81
    %v593 = vmul.f32 %v82, %v82
    %v594 = vmul.f32 %v83, %v83
    %v595 = vmul.f32 %v84, %v84
    %v596 = vmul.f32 %v85, %v85
    %v597 = vmul.f32 %v86, %v86
    %v598 = vmul.f32 %v87, %v87
    %v599 = vmul.f32 %v88, %v88
    %v600 = vmul.f32 %v89, %v89
    %v601 = vmul.f32 %v90, %v90
    %v602 = vmul.f32 %v91, %v91
    %v603 = vmul.f32 %v92, %v92
    %v604 = vmul.f32 %v93, %v93
    %v605 = vmul.f32 %v94, %v94
    %v606 = vmul.f32 %v95, %v95
    %v607 = vmul.f32 %v96, %v96
    %v608 = vmul.f32 %v97, %v97
    %v609 = vmul.f32 %v98, %v98
    %v610 = vmul.f32 %v99, %v99
    %v611 = vmul.f32 %v100, %v100
    %v612 = vmul.f32 %v101, %v101
    %v613 = vmul.f32 %v102, %v102
    %v614 = vmul.f32 %v103, %v103
    %v615 = vmul.f32 %v104, %v104
    %v616 = vmul.f32 %v105, %v105
    %v617 = vmul.f32 %v106, %v106
    %v618 = vmul.f32 %v107, %v107
    %v619 = vmul.f32 %v108, %v108
    %v620 = vmul.f32 %v109, %v109
    %v621 = vmul.f32 %v110, %v110
    %v622 = vmul.f32 %v111, %v111
    %v623 = vmul.f32 %v112, %v112
    %v624 = vadd.f32 %v592, %v593
    %v625 = vrot.slane %v624, 4
    %v626 = vadd.f32 %v624, %v625
    %v627 = vrot.slane %v626, 2
    %v628 = vadd.f32 %v626, %v627
    %v629 = vrot.slane %v628, 1
    %v630 = vadd.f32 %v628, %v629
    %v631 = vadd.f32 %v594, %v595
    %v632 = vrot.slane %v631, 4
    %v633 = vadd.f32 %v631, %v632
    %v634 = vrot.slane %v633, 2
    %v635 = vadd.f32 %v633, %v634
    %v636 = vrot.slane %v635, 1
    %v637 = vadd.f32 %v635, %v636
    %v638 = vadd.f32 %v596, %v597
    %v639 = vrot.slane %v638, 4
    %v640 = vadd.f32 %v638, %v639
    %v641 = vrot.slane %v640, 2
    %v642 = vadd.f32 %v640, %v641
    %v643 = vrot.slane %v642, 1
    %v644 = vadd.f32 %v642, %v643
    %v645 = vadd.f32 %v598, %v599
    %v646 = vrot.slane %v645, 4
    %v647 = vadd.f32 %v645, %v646
    %v648 = vrot.slane %v647, 2
    %v649 = vadd.f32 %v647, %v648
    %v650 = vrot.slane %v649, 1
    %v651 = vadd.f32 %v649, %v650
    %v652 = vadd.f32 %v600, %v601
    %v653 = vrot.slane %v652, 4
    %v654 = vadd.f32 %v652, %v653
    %v655 = vrot.slane %v654, 2
    %v656 = vadd.f32 %v654, %v655
    %v657 = vrot.slane %v656, 1
    %v658 = vadd.f32 %v656, %v657
    %v659 = vadd.f32 %v602, %v603
    %v660 = vrot.slane %v659, 4
    %v661 = vadd.f32 %v659, %v660
    %v662 = vrot.slane %v661, 2
    %v663 = vadd.f32 %v661, %v662
    %v664 = vrot.slane %v663, 1
    %v665 = vadd.f32 %v663, %v664
    %v666 = vadd.f32 %v604, %v605
    %v667 = vrot.slane %v666, 4
    %v668 = vadd.f32 %v666, %v667
    %v669 = vrot.slane %v668, 2
    %v670 = vadd.f32 %v668, %v669
    %v671 = vrot.slane %v670, 1
    %v672 = vadd.f32 %v670, %v671
    %v673 = vadd.f32 %v606, %v607
    %v674 = vrot.slane %v673, 4
    %v675 = vadd.f32 %v673, %v674
    %v676 = vrot.slane %v675, 2
    %v677 = vadd.f32 %v675, %v676
    %v678 = vrot.slane %v677, 1
    %v679 = vadd.f32 %v677, %v678
    %v680 = vadd.f32 %v608, %v609
    %v681 = vrot.slane %v680, 4
    %v682 = vadd.f32 %v680, %v681
    %v683 = vrot.slane %v682, 2
    %v684 = vadd.f32 %v682, %v683
    %v685 = vrot.slane %v684, 1
    %v686 = vadd.f32 %v684, %v685
    %v687 = vadd.f32 %v610, %v611
    %v688 = vrot.slane %v687, 4
    %v689 = vadd.f32 %v687, %v688
    %v690 = vrot.slane %v689, 2
    %v691 = vadd.f32 %v689, %v690
    %v692 = vrot.slane %v691, 1
    %v693 = vadd.f32 %v691, %v692
    %v694 = vadd.f32 %v612, %v613
    %v695 = vrot.slane %v694, 4
    %v696 = vadd.f32 %v694, %v695
    %v697 = vrot.slane %v696, 2
    %v698 = vadd.f32 %v696, %v697
    %v699 = vrot.slane %v698, 1
    %v700 = vadd.f32 %v698, %v699
    %v701 = vadd.f32 %v614, %v615
    %v702 = vrot.slane %v701, 4
    %v703 = vadd.f32 %v701, %v702
    %v704 = vrot.slane %v703, 2
    %v705 = vadd.f32 %v703, %v704
    %v706 = vrot.slane %v705, 1
    %v707 = vadd.f32 %v705, %v706
    %v708 = vadd.f32 %v616, %v617
    %v709 = vrot.slane %v708, 4
    %v710 = vadd.f32 %v708, %v709
    %v711 = vrot.slane %v710, 2
    %v712 = vadd.f32 %v710, %v711
    %v713 = vrot.slane %v712, 1
    %v714 = vadd.f32 %v712, %v713
    %v715 = vadd.f32 %v618, %v619
    %v716 = vrot.slane %v715, 4
    %v717 = vadd.f32 %v715, %v716
    %v718 = vrot.slane %v717, 2
    %v719 = vadd.f32 %v717, %v718
    %v720 = vrot.slane %v719, 1
    %v721 = vadd.f32 %v719, %v720
    %v722 = vadd.f32 %v620, %v621
    %v723 = vrot.slane %v722, 4
    %v724 = vadd.f32 %v722, %v723
    %v725 = vrot.slane %v724, 2
    %v726 = vadd.f32 %v724, %v725
    %v727 = vrot.slane %v726, 1
    %v728 = vadd.f32 %v726, %v727
    %v729 = vadd.f32 %v622, %v623
    %v730 = vrot.slane %v729, 4
    %v731 = vadd.f32 %v729, %v730
    %v732 = vrot.slane %v731, 2
    %v733 = vadd.f32 %v731, %v732
    %v734 = vrot.slane %v733, 1
    %v735 = vadd.f32 %v733, %v734
    %v736 = vmul.f32 %v200, %v200
    %v737 = vmul.f32 %v205, %v205
    %vm738 = vcmask 130048
    %v739 = vsel %vm738, %v736, 0.0
    %740 = vadd.xlane.f32.xlu0 %v739
    %v741 = vpop.xlane.xlu0 %740
    %v742 = vsel %vm738, %v737, 0.0
    %743 = vadd.xlane.f32.xlu0 %v742
    %v744 = vpop.xlane.xlu0 %743
    %v745 = vmax.f32 %v630, 1e-16
    %v746 = vmax.f32 %v637, 1e-16
    %v747 = vmax.f32 %v644, 1e-16
    %v748 = vmax.f32 %v651, 1e-16
    %v749 = vmax.f32 %v658, 1e-16
    %v750 = vmax.f32 %v665, 1e-16
    %v751 = vmax.f32 %v672, 1e-16
    %v752 = vmax.f32 %v679, 1e-16
    %v753 = vmax.f32 %v686, 1e-16
    %v754 = vmax.f32 %v693, 1e-16
    %v755 = vmax.f32 %v700, 1e-16
    %v756 = vmax.f32 %v707, 1e-16
    %v757 = vmax.f32 %v714, 1e-16
    %v758 = vmax.f32 %v721, 1e-16
    %v759 = vmax.f32 %v728, 1e-16
    %v760 = vmax.f32 %v735, 1e-16
    %v761 = vrsqrt.pop %v745
    %v762 = vrsqrt.pop %v746
    %v763 = vrsqrt.pop %v747
    %v764 = vrsqrt.pop %v748
    %v765 = vrsqrt.pop %v749
    %v766 = vrsqrt.pop %v750
    %v767 = vrsqrt.pop %v751
    %v768 = vrsqrt.pop %v752
    %v769 = vrsqrt.pop %v753
    %v770 = vrsqrt.pop %v754
    %v771 = vrsqrt.pop %v755
    %v772 = vrsqrt.pop %v756
    %v773 = vrsqrt.pop %v757
    %v774 = vrsqrt.pop %v758
    %v775 = vrsqrt.pop %v759
    %v776 = vrsqrt.pop %v760
    %v777 = vmax.f32 %v741, 1e-16
    %v778 = vmax.f32 %v744, 1e-16
    %v779 = vrsqrt.pop %v777
    %v780 = vrsqrt.pop %v778
    %v783 = vrot.slane %v779, 1
    %v784 = vrot.slane %v779, 2
    %v785 = vrot.slane %v779, 3
    %v786 = vrot.slane %v779, 4
    %v787 = vrot.slane %v779, 5
    %v788 = vrot.slane %v779, 6
    %v789 = vrot.slane %v779, 7
    %v790 = vrot.slane %v780, 1
    %v791 = vrot.slane %v780, 2
    %v792 = vrot.slane %v780, 3
    %v793 = vrot.slane %v780, 4
    %v794 = vrot.slane %v780, 5
    %v795 = vrot.slane %v780, 6
    %v796 = vrot.slane %v780, 7
    %v813 = vmul.f32 %v761, %v779
    %v814 = vmul.f32 %v762, %v783
    %v815 = vmul.f32 %v763, %v784
    %v816 = vmul.f32 %v764, %v785
    %v817 = vmul.f32 %v765, %v786
    %v818 = vmul.f32 %v766, %v787
    %v819 = vmul.f32 %v767, %v788
    %v820 = vmul.f32 %v768, %v789
    %v821 = vmul.f32 %v769, %v780
    %v822 = vmul.f32 %v770, %v790
    %v823 = vmul.f32 %v771, %v791
    %v824 = vmul.f32 %v772, %v792
    %v825 = vmul.f32 %v773, %v793
    %v826 = vmul.f32 %v774, %v794
    %v827 = vmul.f32 %v775, %v795
    %v828 = vmul.f32 %v776, %v796
    %v829 = vmul.f32 %v486, %v813
    %v830 = vmul.f32 %v493, %v814
    %v831 = vmul.f32 %v500, %v815
    %v832 = vmul.f32 %v507, %v816
    %v833 = vmul.f32 %v514, %v817
    %v834 = vmul.f32 %v521, %v818
    %v835 = vmul.f32 %v528, %v819
    %v836 = vmul.f32 %v535, %v820
    %v837 = vmul.f32 %v542, %v821
    %v838 = vmul.f32 %v549, %v822
    %v839 = vmul.f32 %v556, %v823
    %v840 = vmul.f32 %v563, %v824
    %v841 = vmul.f32 %v570, %v825
    %v842 = vmul.f32 %v577, %v826
    %v843 = vmul.f32 %v584, %v827
    %v844 = vmul.f32 %v591, %v828
    %846 = vset.pattern.permute.xlu0 16
    %847 = vperm.xlu0 %846, %v224
    %v848 = vpop.permute.xlu0 %847
    %851 = vset.pattern.permute.xlu0 16
    %852 = vperm.xlu0 %851, %v225
    %v853 = vpop.permute.xlu0 %852
    %v871 = vrot.slane %v830, 7
    %vm872 = vcmask 1041409
    %v873 = vsel %vm872, %v871, %v829
    %v874 = vrot.slane %v831, 6
    %vm875 = vcmask 1042434
    %v876 = vsel %vm875, %v874, %v873
    %v877 = vrot.slane %v832, 5
    %vm878 = vcmask 1043459
    %v879 = vsel %vm878, %v877, %v876
    %v880 = vrot.slane %v833, 4
    %vm881 = vcmask 1044484
    %v882 = vsel %vm881, %v880, %v879
    %v883 = vrot.slane %v834, 3
    %vm884 = vcmask 1045509
    %v885 = vsel %vm884, %v883, %v882
    %v886 = vrot.slane %v835, 2
    %vm887 = vcmask 1046534
    %v888 = vsel %vm887, %v886, %v885
    %v889 = vrot.slane %v836, 1
    %vm890 = vcmask 1047559
    %v891 = vsel %vm890, %v889, %v888
    %v892 = vrot.slane %v838, 7
    %v893 = vsel %vm872, %v892, %v837
    %v894 = vrot.slane %v839, 6
    %v895 = vsel %vm875, %v894, %v893
    %v896 = vrot.slane %v840, 5
    %v897 = vsel %vm878, %v896, %v895
    %v898 = vrot.slane %v841, 4
    %v899 = vsel %vm881, %v898, %v897
    %v900 = vrot.slane %v842, 3
    %v901 = vsel %vm884, %v900, %v899
    %v902 = vrot.slane %v843, 2
    %v903 = vsel %vm887, %v902, %v901
    %v904 = vrot.slane %v844, 1
    %v905 = vsel %vm890, %v904, %v903
    %v908 = vmul.f32 %v848, %v891
    %v909 = vmul.f32 %v853, %v905
    %910 = vmax.xlane.f32.xlu0 %v908
    %v911 = vpop.xlane.xlu0 %910
    %912 = vmax.xlane.f32.xlu0 %v909
    %v913 = vpop.xlane.xlu0 %912
    %v914 = vsub.f32 %v908, %v911
    %v915 = vsub.f32 %v909, %v913
    %v916 = vmul.f32 %v914, 1.442695
    %v917 = vpow.pop %v916
    %v918 = vmul.f32 %v915, 1.442695
    %v919 = vpow.pop %v918
    %920 = vadd.xlane.f32.xlu0 %v917
    %v921 = vpop.xlane.xlu0 %920
    %922 = vadd.xlane.f32.xlu0 %v919
    %v923 = vpop.xlane.xlu0 %922
    %v924 = vrcp.pop %v921
    %v925 = vmul.f32 %v917, %v924
    %v926 = vrcp.pop %v923
    %v927 = vmul.f32 %v919, %v926
    %929 = vset.pattern.permute.xlu0 17
    %930 = vperm.xlu0 %929, %v235
    %v931 = vpop.permute.xlu0 %930
    %934 = vset.pattern.permute.xlu0 17
    %935 = vperm.xlu0 %934, %v237
    %v936 = vpop.permute.xlu0 %935
    %v938 = vmul.f32 %v931, %v925
    %v939 = vmul.f32 %v936, %v927
    %v940 = vsub.f32 1.0, %v235
    %v941 = vsub.f32 1.0, %v237
    %943 = vset.pattern.permute.xlu0 17
    %944 = vperm.xlu0 %943, %v940
    %v945 = vpop.permute.xlu0 %944
    %948 = vset.pattern.permute.xlu0 17
    %949 = vperm.xlu0 %948, %v941
    %v950 = vpop.permute.xlu0 %949
    %v952 = vmul.f32 %v945, %v113
    %v953 = vmul.f32 %v950, %v114
    %v954 = vadd.f32 %v938, %v952
    %v955 = vadd.f32 %v939, %v953
    %958 = vrot.lane.b32.xlu0 %v954, 1
    %v959 = vpop.permute.xlu0 %958
    %960 = vrot.lane.b32.xlu0 %v955, 1
    %v961 = vpop.permute.xlu0 %960
    %964 = vrot.lane.b32.xlu0 %v954, 127
    %v965 = vpop.permute.xlu0 %964
    %966 = vrot.lane.b32.xlu0 %v955, 127
    %v967 = vpop.permute.xlu0 %966
    %971 = vset.pattern.permute.xlu0 18
    %972 = vperm.xlu0 %971, %v269
    %v973 = vpop.permute.xlu0 %972
    %976 = vset.pattern.permute.xlu0 18
    %977 = vperm.xlu0 %976, %v271
    %v978 = vpop.permute.xlu0 %977
    %v980 = vmul.f32 %v973, %v959
    %v981 = vmul.f32 %v978, %v961
    %982 = vset.pattern.permute.xlu0 19
    %983 = vperm.xlu0 %982, %v269
    %v984 = vpop.permute.xlu0 %983
    %986 = vset.pattern.permute.xlu0 19
    %987 = vperm.xlu0 %986, %v271
    %v988 = vpop.permute.xlu0 %987
    %v990 = vmul.f32 %v984, %v954
    %v991 = vmul.f32 %v988, %v955
    %v992 = vadd.f32 %v980, %v990
    %v993 = vadd.f32 %v981, %v991
    %994 = vset.pattern.permute.xlu0 20
    %995 = vperm.xlu0 %994, %v269
    %v996 = vpop.permute.xlu0 %995
    %998 = vset.pattern.permute.xlu0 20
    %999 = vperm.xlu0 %998, %v271
    %v1000 = vpop.permute.xlu0 %999
    %v1002 = vmul.f32 %v996, %v965
    %v1003 = vmul.f32 %v1000, %v967
    %v1004 = vadd.f32 %v992, %v1002
    %v1005 = vadd.f32 %v993, %v1003
    %v1006 = vmax.f32 %v1004, 1e-38
    %v1007 = vmax.f32 %v1005, 1e-38
    %v1008 = vlog2.pop %v1006
    %v1009 = vmul.f32 %v1008, 0.6931472
    %v1010 = vlog2.pop %v1007
    %v1011 = vmul.f32 %v1010, 0.6931472
    %1013 = vset.pattern.permute.xlu0 21
    %1014 = vperm.xlu0 %1013, %v238
    %v1015 = vpop.permute.xlu0 %1014
    %1018 = vset.pattern.permute.xlu0 21
    %1019 = vperm.xlu0 %1018, %v239
    %v1020 = vpop.permute.xlu0 %1019
    %v1022 = vmul.f32 %v1015, %v1009
    %v1023 = vmul.f32 %v1020, %v1011
    %v1024 = vmul.f32 %v1022, 1.442695
    %v1025 = vpow.pop %v1024
    %v1026 = vmul.f32 %v1023, 1.442695
    %v1027 = vpow.pop %v1026
    %1028 = vadd.xlane.f32.xlu0 %v1025
    %v1029 = vpop.xlane.xlu0 %1028
    %1030 = vadd.xlane.f32.xlu0 %v1027
    %v1031 = vpop.xlane.xlu0 %1030
    %v1032 = vadd.f32 %v1029, 1e-16
    %v1033 = vadd.f32 %v1031, 1e-16
    %v1034 = vrcp.pop %v1032
    %v1035 = vmul.f32 %v1025, %v1034
    %v1036 = vrcp.pop %v1033
    %v1037 = vmul.f32 %v1027, %v1036
    %v1040 = vcombine.high %v1035, %v1035
    %v1042 = vunpack.c.l.s4 1966171168
    %v1043 = vunpack.c.0.s8 %v1042
    %v1044 = vlaneseq
    %v1045 = vshrl.u32 %v1044, 7
    %v1046 = vsub.s32 %v1043, %v1045
    %v1047 = vrot.slane %v1035, %v1046
    %v1049 = vunpack.c.l.s4 1966171168
    %v1050 = vunpack.c.0.s8 %v1049
    %v1051 = vlaneseq
    %v1052 = vshrl.u32 %v1051, 7
    %v1053 = vsub.s32 %v1050, %v1052
    %v1054 = vrot.slane %v1040, %v1053
    %v1055 = vcombine.high %v1047, %v1047
    %v1056 = vcombine.high %v1054, %v1054
    %v1058 = vunpack.c.l.s4 1966171168
    %v1059 = vunpack.c.0.s8 %v1058
    %v1060 = vlaneseq
    %v1061 = vshrl.u32 %v1060, 7
    %v1062 = vsub.s32 %v1059, %v1061
    %v1063 = vrot.slane %v1047, %v1062
    %v1065 = vunpack.c.l.s4 1966171168
    %v1066 = vunpack.c.0.s8 %v1065
    %v1067 = vlaneseq
    %v1068 = vshrl.u32 %v1067, 7
    %v1069 = vsub.s32 %v1066, %v1068
    %v1070 = vrot.slane %v1054, %v1069
    %v1072 = vunpack.c.l.s4 1966171168
    %v1073 = vunpack.c.0.s8 %v1072
    %v1074 = vlaneseq
    %v1075 = vshrl.u32 %v1074, 7
    %v1076 = vsub.s32 %v1073, %v1075
    %v1077 = vrot.slane %v1055, %v1076
    %v1079 = vunpack.c.l.s4 1966171168
    %v1080 = vunpack.c.0.s8 %v1079
    %v1081 = vlaneseq
    %v1082 = vshrl.u32 %v1081, 7
    %v1083 = vsub.s32 %v1080, %v1082
    %v1084 = vrot.slane %v1056, %v1083
    %v1085 = vcombine.high %v1063, %v1063
    %v1086 = vcombine.high %v1070, %v1070
    %v1087 = vcombine.high %v1077, %v1077
    %v1088 = vcombine.high %v1084, %v1084
    %v1089 = vcombine.high %v1037, %v1037
    %v1091 = vunpack.c.l.s4 1966171168
    %v1092 = vunpack.c.0.s8 %v1091
    %v1093 = vlaneseq
    %v1094 = vshrl.u32 %v1093, 7
    %v1095 = vsub.s32 %v1092, %v1094
    %v1096 = vrot.slane %v1037, %v1095
    %v1098 = vunpack.c.l.s4 1966171168
    %v1099 = vunpack.c.0.s8 %v1098
    %v1100 = vlaneseq
    %v1101 = vshrl.u32 %v1100, 7
    %v1102 = vsub.s32 %v1099, %v1101
    %v1103 = vrot.slane %v1089, %v1102
    %v1104 = vcombine.high %v1096, %v1096
    %v1105 = vcombine.high %v1103, %v1103
    %v1107 = vunpack.c.l.s4 1966171168
    %v1108 = vunpack.c.0.s8 %v1107
    %v1109 = vlaneseq
    %v1110 = vshrl.u32 %v1109, 7
    %v1111 = vsub.s32 %v1108, %v1110
    %v1112 = vrot.slane %v1096, %v1111
    %v1114 = vunpack.c.l.s4 1966171168
    %v1115 = vunpack.c.0.s8 %v1114
    %v1116 = vlaneseq
    %v1117 = vshrl.u32 %v1116, 7
    %v1118 = vsub.s32 %v1115, %v1117
    %v1119 = vrot.slane %v1103, %v1118
    %v1121 = vunpack.c.l.s4 1966171168
    %v1122 = vunpack.c.0.s8 %v1121
    %v1123 = vlaneseq
    %v1124 = vshrl.u32 %v1123, 7
    %v1125 = vsub.s32 %v1122, %v1124
    %v1126 = vrot.slane %v1104, %v1125
    %v1128 = vunpack.c.l.s4 1966171168
    %v1129 = vunpack.c.0.s8 %v1128
    %v1130 = vlaneseq
    %v1131 = vshrl.u32 %v1130, 7
    %v1132 = vsub.s32 %v1129, %v1131
    %v1133 = vrot.slane %v1105, %v1132
    %v1134 = vcombine.high %v1112, %v1112
    %v1135 = vcombine.high %v1119, %v1119
    %v1136 = vcombine.high %v1126, %v1126
    %v1137 = vcombine.high %v1133, %v1133
    %v1138 = vlaneseq
    %v1139 = vshrl.u32 %v1138, 7
    %v1140 = vsub.s32 0, %v1139
    %v1141 = vrot.slane %v1063, %v1140
    %v1142 = vlaneseq
    %v1143 = vshrl.u32 %v1142, 7
    %v1144 = vsub.s32 0, %v1143
    %v1145 = vrot.slane %v1077, %v1144
    %v1146 = vlaneseq
    %v1147 = vshrl.u32 %v1146, 7
    %v1148 = vsub.s32 0, %v1147
    %v1149 = vrot.slane %v1085, %v1148
    %v1150 = vlaneseq
    %v1151 = vshrl.u32 %v1150, 7
    %v1152 = vsub.s32 0, %v1151
    %v1153 = vrot.slane %v1087, %v1152
    %v1154 = vlaneseq
    %v1155 = vshrl.u32 %v1154, 7
    %v1156 = vsub.s32 0, %v1155
    %v1157 = vrot.slane %v1070, %v1156
    %v1158 = vlaneseq
    %v1159 = vshrl.u32 %v1158, 7
    %v1160 = vsub.s32 0, %v1159
    %v1161 = vrot.slane %v1084, %v1160
    %v1162 = vlaneseq
    %v1163 = vshrl.u32 %v1162, 7
    %v1164 = vsub.s32 0, %v1163
    %v1165 = vrot.slane %v1086, %v1164
    %v1166 = vlaneseq
    %v1167 = vshrl.u32 %v1166, 7
    %v1168 = vsub.s32 0, %v1167
    %v1169 = vrot.slane %v1088, %v1168
    %v1170 = vlaneseq
    %v1171 = vshrl.u32 %v1170, 7
    %v1172 = vsub.s32 0, %v1171
    %v1173 = vrot.slane %v1112, %v1172
    %v1174 = vlaneseq
    %v1175 = vshrl.u32 %v1174, 7
    %v1176 = vsub.s32 0, %v1175
    %v1177 = vrot.slane %v1126, %v1176
    %v1178 = vlaneseq
    %v1179 = vshrl.u32 %v1178, 7
    %v1180 = vsub.s32 0, %v1179
    %v1181 = vrot.slane %v1134, %v1180
    %v1182 = vlaneseq
    %v1183 = vshrl.u32 %v1182, 7
    %v1184 = vsub.s32 0, %v1183
    %v1185 = vrot.slane %v1136, %v1184
    %v1186 = vlaneseq
    %v1187 = vshrl.u32 %v1186, 7
    %v1188 = vsub.s32 0, %v1187
    %v1189 = vrot.slane %v1119, %v1188
    %v1190 = vlaneseq
    %v1191 = vshrl.u32 %v1190, 7
    %v1192 = vsub.s32 0, %v1191
    %v1193 = vrot.slane %v1133, %v1192
    %v1194 = vlaneseq
    %v1195 = vshrl.u32 %v1194, 7
    %v1196 = vsub.s32 0, %v1195
    %v1197 = vrot.slane %v1135, %v1196
    %v1198 = vlaneseq
    %v1199 = vshrl.u32 %v1198, 7
    %v1200 = vsub.s32 0, %v1199
    %v1201 = vrot.slane %v1137, %v1200
    %v1218 = vmul.f32 %v81, %v1141
    %v1219 = vmul.f32 %v82, %v1141
    %v1220 = vmul.f32 %v83, %v1145
    %v1221 = vmul.f32 %v84, %v1145
    %v1222 = vmul.f32 %v85, %v1149
    %v1223 = vmul.f32 %v86, %v1149
    %v1224 = vmul.f32 %v87, %v1153
    %v1225 = vmul.f32 %v88, %v1153
    %v1226 = vmul.f32 %v89, %v1157
    %v1227 = vmul.f32 %v90, %v1157
    %v1228 = vmul.f32 %v91, %v1161
    %v1229 = vmul.f32 %v92, %v1161
    %v1230 = vmul.f32 %v93, %v1165
    %v1231 = vmul.f32 %v94, %v1165
    %v1232 = vmul.f32 %v95, %v1169
    %v1233 = vmul.f32 %v96, %v1169
    %v1234 = vmul.f32 %v97, %v1173
    %v1235 = vmul.f32 %v98, %v1173
    %v1236 = vmul.f32 %v99, %v1177
    %v1237 = vmul.f32 %v100, %v1177
    %v1238 = vmul.f32 %v101, %v1181
    %v1239 = vmul.f32 %v102, %v1181
    %v1240 = vmul.f32 %v103, %v1185
    %v1241 = vmul.f32 %v104, %v1185
    %v1242 = vmul.f32 %v105, %v1189
    %v1243 = vmul.f32 %v106, %v1189
    %v1244 = vmul.f32 %v107, %v1193
    %v1245 = vmul.f32 %v108, %v1193
    %v1246 = vmul.f32 %v109, %v1197
    %v1247 = vmul.f32 %v110, %v1197
    %v1248 = vmul.f32 %v111, %v1201
    %v1249 = vmul.f32 %v112, %v1201
    %1250 = vadd.xlane.f32.xlu0 %v1218
    %v1251 = vpop.xlane.xlu0 %1250
    %1252 = vadd.xlane.f32.xlu0 %v1219
    %v1253 = vpop.xlane.xlu0 %1252
    %1254 = vadd.xlane.f32.xlu0 %v1220
    %v1255 = vpop.xlane.xlu0 %1254
    %1256 = vadd.xlane.f32.xlu0 %v1221
    %v1257 = vpop.xlane.xlu0 %1256
    %1258 = vadd.xlane.f32.xlu0 %v1222
    %v1259 = vpop.xlane.xlu0 %1258
    %1260 = vadd.xlane.f32.xlu0 %v1223
    %v1261 = vpop.xlane.xlu0 %1260
    %1262 = vadd.xlane.f32.xlu0 %v1224
    %v1263 = vpop.xlane.xlu0 %1262
    %1264 = vadd.xlane.f32.xlu0 %v1225
    %v1265 = vpop.xlane.xlu0 %1264
    %1266 = vadd.xlane.f32.xlu0 %v1226
    %v1267 = vpop.xlane.xlu0 %1266
    %1268 = vadd.xlane.f32.xlu0 %v1227
    %v1269 = vpop.xlane.xlu0 %1268
    %1270 = vadd.xlane.f32.xlu0 %v1228
    %v1271 = vpop.xlane.xlu0 %1270
    %1272 = vadd.xlane.f32.xlu0 %v1229
    %v1273 = vpop.xlane.xlu0 %1272
    %1274 = vadd.xlane.f32.xlu0 %v1230
    %v1275 = vpop.xlane.xlu0 %1274
    %1276 = vadd.xlane.f32.xlu0 %v1231
    %v1277 = vpop.xlane.xlu0 %1276
    %1278 = vadd.xlane.f32.xlu0 %v1232
    %v1279 = vpop.xlane.xlu0 %1278
    %1280 = vadd.xlane.f32.xlu0 %v1233
    %v1281 = vpop.xlane.xlu0 %1280
    %1282 = vadd.xlane.f32.xlu0 %v1234
    %v1283 = vpop.xlane.xlu0 %1282
    %1284 = vadd.xlane.f32.xlu0 %v1235
    %v1285 = vpop.xlane.xlu0 %1284
    %1286 = vadd.xlane.f32.xlu0 %v1236
    %v1287 = vpop.xlane.xlu0 %1286
    %1288 = vadd.xlane.f32.xlu0 %v1237
    %v1289 = vpop.xlane.xlu0 %1288
    %1290 = vadd.xlane.f32.xlu0 %v1238
    %v1291 = vpop.xlane.xlu0 %1290
    %1292 = vadd.xlane.f32.xlu0 %v1239
    %v1293 = vpop.xlane.xlu0 %1292
    %1294 = vadd.xlane.f32.xlu0 %v1240
    %v1295 = vpop.xlane.xlu0 %1294
    %1296 = vadd.xlane.f32.xlu0 %v1241
    %v1297 = vpop.xlane.xlu0 %1296
    %1298 = vadd.xlane.f32.xlu0 %v1242
    %v1299 = vpop.xlane.xlu0 %1298
    %1300 = vadd.xlane.f32.xlu0 %v1243
    %v1301 = vpop.xlane.xlu0 %1300
    %1302 = vadd.xlane.f32.xlu0 %v1244
    %v1303 = vpop.xlane.xlu0 %1302
    %1304 = vadd.xlane.f32.xlu0 %v1245
    %v1305 = vpop.xlane.xlu0 %1304
    %1306 = vadd.xlane.f32.xlu0 %v1246
    %v1307 = vpop.xlane.xlu0 %1306
    %1308 = vadd.xlane.f32.xlu0 %v1247
    %v1309 = vpop.xlane.xlu0 %1308
    %1310 = vadd.xlane.f32.xlu0 %v1248
    %v1311 = vpop.xlane.xlu0 %1310
    %1312 = vadd.xlane.f32.xlu0 %v1249
    %v1313 = vpop.xlane.xlu0 %1312
    %v1346 = vlaneseq
    %v1347 = vand.u32 %v1346, 127
    %v1348 = vlaneseq
    %v1349 = vshrl.u32 %v1348, 7
    %v1350 = vsub.s32 %v1347, %v1349
    %v1351 = vrot.slane %v1251, %v1350
    %v1352 = vadd.s32 %v1347, 4294967288
    %v1353 = vlaneseq
    %v1354 = vshrl.u32 %v1353, 7
    %v1355 = vsub.s32 %v1352, %v1354
    %v1356 = vrot.slane %v1253, %v1355
    %vm1357 = vcmask 130112
    %v1358 = vsel %vm1357, %v1356, %v1351
    %v1359 = vlaneseq
    %v1360 = vshrl.u32 %v1359, 7
    %v1361 = vsub.s32 %v1347, %v1360
    %v1362 = vrot.slane %v1255, %v1361
    %v1363 = vlaneseq
    %v1364 = vshrl.u32 %v1363, 7
    %v1365 = vsub.s32 %v1352, %v1364
    %v1366 = vrot.slane %v1257, %v1365
    %v1367 = vsel %vm1357, %v1366, %v1362
    %v1368 = vlaneseq
    %v1369 = vshrl.u32 %v1368, 7
    %v1370 = vsub.s32 %v1347, %v1369
    %v1371 = vrot.slane %v1259, %v1370
    %v1372 = vlaneseq
    %v1373 = vshrl.u32 %v1372, 7
    %v1374 = vsub.s32 %v1352, %v1373
    %v1375 = vrot.slane %v1261, %v1374
    %v1376 = vsel %vm1357, %v1375, %v1371
    %v1377 = vlaneseq
    %v1378 = vshrl.u32 %v1377, 7
    %v1379 = vsub.s32 %v1347, %v1378
    %v1380 = vrot.slane %v1263, %v1379
    %v1381 = vlaneseq
    %v1382 = vshrl.u32 %v1381, 7
    %v1383 = vsub.s32 %v1352, %v1382
    %v1384 = vrot.slane %v1265, %v1383
    %v1385 = vsel %vm1357, %v1384, %v1380
    %v1386 = vlaneseq
    %v1387 = vshrl.u32 %v1386, 7
    %v1388 = vsub.s32 %v1347, %v1387
    %v1389 = vrot.slane %v1267, %v1388
    %v1390 = vlaneseq
    %v1391 = vshrl.u32 %v1390, 7
    %v1392 = vsub.s32 %v1352, %v1391
    %v1393 = vrot.slane %v1269, %v1392
    %v1394 = vsel %vm1357, %v1393, %v1389
    %v1395 = vlaneseq
    %v1396 = vshrl.u32 %v1395, 7
    %v1397 = vsub.s32 %v1347, %v1396
    %v1398 = vrot.slane %v1271, %v1397
    %v1399 = vlaneseq
    %v1400 = vshrl.u32 %v1399, 7
    %v1401 = vsub.s32 %v1352, %v1400
    %v1402 = vrot.slane %v1273, %v1401
    %v1403 = vsel %vm1357, %v1402, %v1398
    %v1404 = vlaneseq
    %v1405 = vshrl.u32 %v1404, 7
    %v1406 = vsub.s32 %v1347, %v1405
    %v1407 = vrot.slane %v1275, %v1406
    %v1408 = vlaneseq
    %v1409 = vshrl.u32 %v1408, 7
    %v1410 = vsub.s32 %v1352, %v1409
    %v1411 = vrot.slane %v1277, %v1410
    %v1412 = vsel %vm1357, %v1411, %v1407
    %v1413 = vlaneseq
    %v1414 = vshrl.u32 %v1413, 7
    %v1415 = vsub.s32 %v1347, %v1414
    %v1416 = vrot.slane %v1279, %v1415
    %v1417 = vlaneseq
    %v1418 = vshrl.u32 %v1417, 7
    %v1419 = vsub.s32 %v1352, %v1418
    %v1420 = vrot.slane %v1281, %v1419
    %v1421 = vsel %vm1357, %v1420, %v1416
    %v1422 = vlaneseq
    %v1423 = vshrl.u32 %v1422, 7
    %v1424 = vsub.s32 %v1347, %v1423
    %v1425 = vrot.slane %v1283, %v1424
    %v1426 = vlaneseq
    %v1427 = vshrl.u32 %v1426, 7
    %v1428 = vsub.s32 %v1352, %v1427
    %v1429 = vrot.slane %v1285, %v1428
    %v1430 = vsel %vm1357, %v1429, %v1425
    %v1431 = vlaneseq
    %v1432 = vshrl.u32 %v1431, 7
    %v1433 = vsub.s32 %v1347, %v1432
    %v1434 = vrot.slane %v1287, %v1433
    %v1435 = vlaneseq
    %v1436 = vshrl.u32 %v1435, 7
    %v1437 = vsub.s32 %v1352, %v1436
    %v1438 = vrot.slane %v1289, %v1437
    %v1439 = vsel %vm1357, %v1438, %v1434
    %v1440 = vlaneseq
    %v1441 = vshrl.u32 %v1440, 7
    %v1442 = vsub.s32 %v1347, %v1441
    %v1443 = vrot.slane %v1291, %v1442
    %v1444 = vlaneseq
    %v1445 = vshrl.u32 %v1444, 7
    %v1446 = vsub.s32 %v1352, %v1445
    %v1447 = vrot.slane %v1293, %v1446
    %v1448 = vsel %vm1357, %v1447, %v1443
    %v1449 = vlaneseq
    %v1450 = vshrl.u32 %v1449, 7
    %v1451 = vsub.s32 %v1347, %v1450
    %v1452 = vrot.slane %v1295, %v1451
    %v1453 = vlaneseq
    %v1454 = vshrl.u32 %v1453, 7
    %v1455 = vsub.s32 %v1352, %v1454
    %v1456 = vrot.slane %v1297, %v1455
    %v1457 = vsel %vm1357, %v1456, %v1452
    %v1458 = vlaneseq
    %v1459 = vshrl.u32 %v1458, 7
    %v1460 = vsub.s32 %v1347, %v1459
    %v1461 = vrot.slane %v1299, %v1460
    %v1462 = vlaneseq
    %v1463 = vshrl.u32 %v1462, 7
    %v1464 = vsub.s32 %v1352, %v1463
    %v1465 = vrot.slane %v1301, %v1464
    %v1466 = vsel %vm1357, %v1465, %v1461
    %v1467 = vlaneseq
    %v1468 = vshrl.u32 %v1467, 7
    %v1469 = vsub.s32 %v1347, %v1468
    %v1470 = vrot.slane %v1303, %v1469
    %v1471 = vlaneseq
    %v1472 = vshrl.u32 %v1471, 7
    %v1473 = vsub.s32 %v1352, %v1472
    %v1474 = vrot.slane %v1305, %v1473
    %v1475 = vsel %vm1357, %v1474, %v1470
    %v1476 = vlaneseq
    %v1477 = vshrl.u32 %v1476, 7
    %v1478 = vsub.s32 %v1347, %v1477
    %v1479 = vrot.slane %v1307, %v1478
    %v1480 = vlaneseq
    %v1481 = vshrl.u32 %v1480, 7
    %v1482 = vsub.s32 %v1352, %v1481
    %v1483 = vrot.slane %v1309, %v1482
    %v1484 = vsel %vm1357, %v1483, %v1479
    %v1485 = vlaneseq
    %v1486 = vshrl.u32 %v1485, 7
    %v1487 = vsub.s32 %v1347, %v1486
    %v1488 = vrot.slane %v1311, %v1487
    %v1489 = vlaneseq
    %v1490 = vshrl.u32 %v1489, 7
    %v1491 = vsub.s32 %v1352, %v1490
    %v1492 = vrot.slane %v1313, %v1491
    %v1493 = vsel %vm1357, %v1492, %v1488
    %v1494 = vsel %vm872, %v1367, %v1358
    %v1495 = vsel %vm875, %v1376, %v1494
    %v1496 = vsel %vm878, %v1385, %v1495
    %v1497 = vsel %vm881, %v1394, %v1496
    %v1498 = vsel %vm884, %v1403, %v1497
    %v1499 = vsel %vm887, %v1412, %v1498
    %v1500 = vsel %vm890, %v1421, %v1499
    %v1501 = vsel %vm872, %v1439, %v1430
    %v1502 = vsel %vm875, %v1448, %v1501
    %v1503 = vsel %vm878, %v1457, %v1502
    %v1504 = vsel %vm881, %v1466, %v1503
    %v1505 = vsel %vm884, %v1475, %v1504
    %v1506 = vsel %vm887, %v1484, %v1505
    %v1507 = vsel %vm890, %v1493, %v1506
    %v1510 = vsel %vm738, %v1500, 0.0
    %v1511 = vsel %vm738, %v1507, 0.0
    %1512 = vst [vmem:[#allocation11] sm:$0xff] %v1035
    %1513 = vst [vmem:[#allocation11 + $0x8] sm:$0xff] %v1037
    %1514 = vst [vmem:[#allocation10] sm:$0xff] %v1510
    %1515 = vst [vmem:[#allocation10 + $0x8] sm:$0xff] %v1511
    // Predicated region
    $region38: #{tpu_custom_call.1} parent=1 // pred_check
      _
    $region39: #{tpu_custom_call.1} parent=1 // pred_check_branch
      %1517 = sbr.rel (0) target = $region41
    $region40: #{tpu_custom_call.1} parent=1 // pred_region
      %s1519 = ssub.s32 256, 256
      %1520 = vsyncadd [#allocation4], %s1519
      %s1521 = sshll.u32 [#allocation10], 4
      %s1522 = int_to_ptr.vmem [resolvable:$true] %s1521
      %1527 = dma.vmem_to_hbm [thread:$0]  %s1522, 256, %s5, [#allocation4], 128, 128, 8
    $region41: #{tpu_custom_call.1} parent=1 // pred_fallthru
      _
    // Predicated region
    $region42: #{tpu_custom_call.1} parent=1 // pred_check
      _
    $region43: #{tpu_custom_call.1} parent=1 // pred_check_branch
      %1529 = sbr.rel (0) target = $region45
    $region44: #{tpu_custom_call.1} parent=1 // pred_region
      %s1531 = ssub.s32 256, 256
      %1532 = vsyncadd [#allocation12], %s1531
      %s1533 = sshll.u32 [#allocation11], 4
      %s1534 = int_to_ptr.vmem [resolvable:$true] %s1533
      %1539 = dma.vmem_to_hbm [thread:$0]  %s1534, 256, %s6, [#allocation12], 128, 128, 8
    $region45: #{tpu_custom_call.1} parent=1 // pred_fallthru
      _
    // Predicated region
    $region46: #{tpu_custom_call.1} parent=1 // pred_check
      _
    $region47: #{tpu_custom_call.1} parent=1 // pred_check_branch
      %1541 = sbr.rel (0) target = $region49
    $region48: #{tpu_custom_call.1} parent=1 // pred_region
      %1542 = dma.done [#allocation4], 256
    $region49: #{tpu_custom_call.1} parent=1 // pred_fallthru
      _
    // Predicated region
    $region50: #{tpu_custom_call.1} parent=1 // pred_check
      _
    $region51: #{tpu_custom_call.1} parent=1 // pred_check_branch
      %1544 = sbr.rel (0) target = $region53
    $region52: #{tpu_custom_call.1} parent=1 // pred_region
      %1545 = dma.done [#allocation12], 256
    $region53: #{tpu_custom_call.1} parent=1 // pred_fallthru
      _
    %1546 = vsyncpa [#allocation3], 1
    %1547 = vsyncpa [#allocation6], 1
    %1548 = vsyncpa [#allocation9], 1
    %1549 = vsyncpa [#allocation4], 1
    %1550 = vsyncpa [#allocation12], 1

</llo_original>
